<compile_context>
chip_gen: v7x
topology: tpu7x:2x2x1
jax: 0.10.0
libtpu: 0.0.40
codegen_flags: <defaults>
</compile_context>

<pallas_src>
import jax
import jax.numpy as jnp
from jax.experimental import pallas as pl
from jax.experimental.pallas import tpu as pltpu


# ----------------------------- Pallas kernel -------------------------------

def _fused_backbone_kernel(patches_ref, w1_ref, b1_ref, w2_ref, b2_ref, out_ref):
    # patches_ref : (1, M, Kp)    im2col patches for this application
    # w1_ref      : (1, Kp, Hp)   conv1 weights (selected online/target set)
    # b1_ref      : (1, 1,  Hp)
    # w2_ref      : (1, Hp, F)    1x1 conv2 weights
    # b2_ref      : (1, 1,  F)
    # out_ref     : (1, M,  F)
    p = patches_ref[0].astype(jnp.bfloat16)                       # (M, Kp)
    w1 = w1_ref[0].astype(jnp.bfloat16)                           # (Kp, Hp)
    h = jnp.dot(p, w1, preferred_element_type=jnp.float32)        # f32 acc
    h = jnp.maximum(h + b1_ref[0], 0.0)                           # bias + ReLU in f32
    w2 = w2_ref[0].astype(jnp.bfloat16)                           # (Hp, F)
    o = jnp.dot(h.astype(jnp.bfloat16), w2,
                preferred_element_type=jnp.float32)
    out_ref[0] = (o + b2_ref[0]).astype(out_ref.dtype)


def _fused_backbone_call(patches, w1s, b1s, w2s, b2s):
    """Run the 3 backbone applications in one pallas_call.

    patches : (2, M, Kp)  [0] = im2col(images1), [1] = im2col(images2)
    w*/b*   : (2, ...)    [0] = online params,   [1] = target params
    grid n  : 0 -> online(images1), 1 -> target(images2), 2 -> target(images1)
    Returns (3, M, F) float32.
    """
    _, M, Kp = patches.shape
    Hp = w1s.shape[-1]
    F = w2s.shape[-1]
    NAPP = 3

    # patches: 0->block 0, 1->block 1, 2->block 0 (shared images1 patches)
    patch_map = lambda n: (n % 2, 0, 0)
    # weights: 0->online(0), 1,2->target(1); consecutive same index => no re-DMA
    weight_map = lambda n: (jnp.minimum(n, 1), 0, 0)

    flops = 2 * NAPP * M * (Kp * Hp + Hp * F)
    bytes_accessed = 4 * (patches.size + w1s.size + b1s.size +
                          w2s.size + b2s.size + NAPP * M * F)

    return pl.pallas_call(
        _fused_backbone_kernel,
        out_shape=jax.ShapeDtypeStruct((NAPP, M, F), jnp.float32),
        grid_spec=pltpu.PrefetchScalarGridSpec(
            num_scalar_prefetch=0,
            grid=(NAPP,),
            in_specs=[
                pl.BlockSpec((1, M, Kp), patch_map),
                pl.BlockSpec((1, Kp, Hp), weight_map),
                pl.BlockSpec((1, 1, Hp), weight_map),
                pl.BlockSpec((1, Hp, F), weight_map),
                pl.BlockSpec((1, 1, F), weight_map),
            ],
            out_specs=pl.BlockSpec((1, M, F), lambda n: (n, 0, 0)),
        ),
        compiler_params=pltpu.CompilerParams(
            # "parallel": lets v7x shard the 3 applications across its 2 TCs;
            # no-op on single-TC v5e/v6e.
            dimension_semantics=("parallel",)),
        cost_estimate=pl.CostEstimate(
            flops=flops, transcendentals=0, bytes_accessed=bytes_accessed),
    )(patches, w1s, b1s, w2s, b2s)


# ----------------------------- JAX glue -------------------------------------

def _im2col_3x3(x_nhwc):
    """3x3, stride-1, pad-1 patch extraction (pure data movement)."""
    # TODO(synk): for large H,W do this in-kernel (halo DMA / pltpu.roll) to
    # avoid materializing the 9x-expanded activation in HBM.
    B, H, W, C = x_nhwc.shape
    xp = jnp.pad(x_nhwc, ((0, 0), (1, 1), (1, 1), (0, 0)))
    cols = [xp[:, dh:dh + H, dw:dw + W, :] for dh in range(3) for dw in range(3)]
    patches = jnp.concatenate(cols, axis=-1)                      # (B,H,W,9C)
    return patches.reshape(B, H * W, 9 * C)


def _round_up(x, m):
    return ((x + m - 1) // m) * m


def _pad_axis(x, axis, target):
    pad = target - x.shape[axis]
    if pad <= 0:
        return x
    widths = [(0, 0)] * x.ndim
    widths[axis] = (0, pad)
    return jnp.pad(x, widths)


@jax.jit
def momentum_model_forward(images1, images2, online, target):
    """MomentumModel.forward equivalent.

    Returns (embeddings, target_embeddings, target_im1_embeddings), each NHWC
    (B, H, W, feature_dim) — torch.no_grad()/.detach() have no forward-value
    effect.
    """
    B, C, H, W = images1.shape
    x1 = jnp.transpose(images1, (0, 2, 3, 1))                     # NCHW -> NHWC
    x2 = jnp.transpose(images2, (0, 2, 3, 1))

    # im2col once per distinct image (images1 shared by two applications).
    p1 = _im2col_3x3(x1)                                          # (B, HW, K)
    p2 = _im2col_3x3(x2)
    K = p1.shape[-1]
    M = B * H * W
    Kp = _round_up(K, 8)
    HIDDEN = online["w1"].shape[-1]
    Hp = _round_up(HIDDEN, 128)
    F = online["w2"].shape[-1]

    p1 = _pad_axis(p1.reshape(1, M, K), -1, Kp)
    p2 = _pad_axis(p2.reshape(1, M, K), -1, Kp)
    patches = jnp.concatenate([p1, p2], axis=0)                   # (2, M, Kp)

    # Stack online/target parameter sets and zero-pad K -> Kp, HIDDEN -> Hp.
    w1s = jnp.stack([online["w1"], target["w1"]])                 # (2, K, HIDDEN)
    b1s = jnp.stack([online["b1"], target["b1"]])                 # (2, 1, HIDDEN)
    w2s = jnp.stack([online["w2"], target["w2"]])                 # (2, HIDDEN, F)
    b2s = jnp.stack([online["b2"], target["b2"]])                 # (2, 1, F)
    w1s = _pad_axis(_pad_axis(w1s, 1, Kp), 2, Hp)                 # (2, Kp, Hp)
    b1s = _pad_axis(b1s, 2, Hp)                                   # (2, 1, Hp)
    w2s = _pad_axis(w2s, 1, Hp)                                   # (2, Hp, F)

    out = _fused_backbone_call(patches, w1s, b1s, w2s, b2s)       # (3, M, F)
    out = out.reshape(3, B, H, W, F)
    return out[0], out[1], out[2]


# --------------------------- parameters --------------------------------------

def init_params(key, input_f, hidden, feature_dim):
    k1, k2, k3, k4 = jax.random.split(key, 4)
    # conv1 weight in im2col layout: (kh*kw*in, hidden)
    w1 = jax.random.normal(k1, (9 * input_f, hidden), jnp.float32) * 0.1
    b1 = jax.random.normal(k2, (1, hidden), jnp.float32) * 0.1
    # conv2 (1x1) weight: (hidden, feature_dim)
    w2 = jax.random.normal(k3, (hidden, feature_dim), jnp.float32) * 0.1
    b2 = jax.random.normal(k4, (1, feature_dim), jnp.float32) * 0.1
    online = dict(w1=w1, b1=b1, w2=w2, b2=b2)
    # Target network is an exact parameter copy (as in MomentumModel.__init__).
    target = {k: v for k, v in online.items()}
    return online, target


# Plain-JAX f32 reference (backbone semantics, for correctness checking).
def ref_backbone(x_nchw, p):
    x = jnp.transpose(x_nchw, (0, 2, 3, 1))
    patches = _im2col_3x3(x)
    h = jnp.maximum(jnp.einsum("bnk,kh->bnh", patches, p["w1"]) + p["b1"], 0.0)
    o = jnp.einsum("bnh,hf->bnf", h, p["w2"]) + p["b2"]
    return o.reshape(x.shape[0], x.shape[1], x.shape[2], -1)


# TODO(synk): update_target_network / update_memory_bank / get_logits_labels
# rely on torch.randperm sampling and mutable buffers and are not part of
# forward(); not implemented here.


if __name__ == "__main__":
    B, C_IN, H, W = 2, 2, 16, 16          # magnitude=False -> input_f=2
    HIDDEN, FEAT = 32, 128                # feature_dim=128 (module default)

    key = jax.random.PRNGKey(0)
    kx1, kx2, kp = jax.random.split(key, 3)
    images1 = jax.random.normal(kx1, (B, C_IN, H, W), jnp.float32)   # NCHW
    images2 = jax.random.normal(kx2, (B, C_IN, H, W), jnp.float32)   # NCHW

    online, target = init_params(kp, C_IN, HIDDEN, FEAT)

    emb, temb, temb1 = momentum_model_forward(images1, images2, online, target)
    jax.block_until_ready((emb, temb, temb1))

    assert emb.shape == (B, H, W, FEAT)
    assert temb.shape == (B, H, W, FEAT)
    assert temb1.shape == (B, H, W, FEAT)

    # bf16 MXU operands with f32 accumulation -> loosened tolerance vs f32 ref.
    ref1 = ref_backbone(images1, online)
    ref2 = ref_backbone(images2, target)
    assert jnp.allclose(emb, ref1, rtol=2e-2, atol=2e-2)
    assert jnp.allclose(temb, ref2, rtol=2e-2, atol=2e-2)
    # Target net is an exact copy at init, so target(images1) == online(images1)
    # (identical math in two grid steps).  Holds only at init.
    assert jnp.allclose(temb1, emb, rtol=1e-5, atol=1e-5)

    print("KERNEL_OK")
</pallas_src>

<mosaic_0001>
module attributes {stable_mosaic.version = 11 : i64} {
  func.func @_fused_backbone_kernel(%arg0: i32, %arg1: memref<1x512x24xf32, #tpu.memory_space<vmem>>, %arg2: memref<1x24x128xf32, #tpu.memory_space<vmem>>, %arg3: memref<1x1x128xf32, #tpu.memory_space<vmem>>, %arg4: memref<1x128x128xf32, #tpu.memory_space<vmem>>, %arg5: memref<1x1x128xf32, #tpu.memory_space<vmem>>, %arg6: memref<1x512x128xf32, #tpu.memory_space<vmem>>) attributes {dimension_semantics = [#tpu.dimension_semantics<parallel>], iteration_bounds = array<i64: 3>, scalar_prefetch = 0 : i64, scratch_operands = 0 : i64, tpu.core_type = #tpu.core_type<tc>, window_params = [{transform_indices = @transform_0, window_bounds = array<i64: 1, 512, 24>}, {transform_indices = @transform_1, window_bounds = array<i64: 1, 24, 128>}, {transform_indices = @transform_2, window_bounds = array<i64: 1, 1, 128>}, {transform_indices = @transform_3, window_bounds = array<i64: 1, 128, 128>}, {transform_indices = @transform_4, window_bounds = array<i64: 1, 1, 128>}, {transform_indices = @transform_5, window_bounds = array<i64: 1, 512, 128>}]} {
    %c0 = arith.constant 0 : index
    %c0_0 = arith.constant 0 : index
    %c0_1 = arith.constant 0 : index
    %0 = vector.load %arg1[%c0, %c0_0, %c0_1] : memref<1x512x24xf32, #tpu.memory_space<vmem>>, vector<1x512x24xf32>
    %1 = vector.shape_cast %0 : vector<1x512x24xf32> to vector<512x24xf32>
    %2 = arith.truncf %1 : vector<512x24xf32> to vector<512x24xbf16>
    %c0_2 = arith.constant 0 : index
    %c0_3 = arith.constant 0 : index
    %c0_4 = arith.constant 0 : index
    %3 = vector.load %arg2[%c0_2, %c0_3, %c0_4] : memref<1x24x128xf32, #tpu.memory_space<vmem>>, vector<1x24x128xf32>
    %4 = vector.shape_cast %3 : vector<1x24x128xf32> to vector<24x128xf32>
    %5 = arith.truncf %4 : vector<24x128xf32> to vector<24x128xbf16>
    %cst = arith.constant dense<0.000000e+00> : vector<512x128xf32>
    %6 = tpu.matmul %2, %5, %cst {dimension_numbers = #tpu.dot_dimension_numbers<[1], [0], [0], [1], [0, 0, 1, 1], [], []>} : vector<512x24xbf16>, vector<24x128xbf16>, vector<512x128xf32> -> vector<512x128xf32>
    %c0_5 = arith.constant 0 : index
    %c0_6 = arith.constant 0 : index
    %c0_7 = arith.constant 0 : index
    %7 = vector.load %arg3[%c0_5, %c0_6, %c0_7] : memref<1x1x128xf32, #tpu.memory_space<vmem>>, vector<1x1x128xf32>
    %8 = vector.shape_cast %7 : vector<1x1x128xf32> to vector<1x128xf32>
    %9 = vector.broadcast %8 : vector<1x128xf32> to vector<512x128xf32>
    %10 = arith.addf %6, %9 : vector<512x128xf32>
    %cst_8 = arith.constant 0.000000e+00 : f32
    %11 = vector.broadcast %cst_8 : f32 to vector<512x128xf32>
    %12 = arith.maximumf %10, %11 : vector<512x128xf32>
    %c0_9 = arith.constant 0 : index
    %c0_10 = arith.constant 0 : index
    %c0_11 = arith.constant 0 : index
    %13 = vector.load %arg4[%c0_9, %c0_10, %c0_11] : memref<1x128x128xf32, #tpu.memory_space<vmem>>, vector<1x128x128xf32>
    %14 = vector.shape_cast %13 : vector<1x128x128xf32> to vector<128x128xf32>
    %15 = arith.truncf %14 : vector<128x128xf32> to vector<128x128xbf16>
    %16 = arith.truncf %12 : vector<512x128xf32> to vector<512x128xbf16>
    %cst_12 = arith.constant dense<0.000000e+00> : vector<512x128xf32>
    %17 = tpu.matmul %16, %15, %cst_12 {dimension_numbers = #tpu.dot_dimension_numbers<[1], [0], [0], [1], [0, 0, 1, 1], [], []>} : vector<512x128xbf16>, vector<128x128xbf16>, vector<512x128xf32> -> vector<512x128xf32>
    %c0_13 = arith.constant 0 : index
    %c0_14 = arith.constant 0 : index
    %c0_15 = arith.constant 0 : index
    %18 = vector.load %arg5[%c0_13, %c0_14, %c0_15] : memref<1x1x128xf32, #tpu.memory_space<vmem>>, vector<1x1x128xf32>
    %19 = vector.shape_cast %18 : vector<1x1x128xf32> to vector<1x128xf32>
    %20 = vector.broadcast %19 : vector<1x128xf32> to vector<512x128xf32>
    %21 = arith.addf %17, %20 : vector<512x128xf32>
    %c0_16 = arith.constant 0 : index
    %c0_17 = arith.constant 0 : index
    %c0_18 = arith.constant 0 : index
    %22 = vector.load %arg6[%c0_16, %c0_17, %c0_18] : memref<1x512x128xf32, #tpu.memory_space<vmem>>, vector<1x512x128xf32>
    %23 = vector.shape_cast %22 : vector<1x512x128xf32> to vector<512x128xf32>
    %24 = vector.shape_cast %21 : vector<512x128xf32> to vector<1x512x128xf32>
    tpu.vector_store %arg6[%c0_16, %c0_17, %c0_18], %24 {strides = array<i32>} : memref<1x512x128xf32, #tpu.memory_space<vmem>>, vector<1x512x128xf32>,
    return
  }
  func.func @transform_0(%arg0: i32) -> (i32, i32, i32) {
    %c2_i32 = arith.constant 2 : i32
    %c0_i32 = arith.constant 0 : i32
    %0 = arith.cmpi eq, %c2_i32, %c0_i32 : i32
    %c1_i32 = arith.constant 1 : i32
    %1 = arith.select %0, %c1_i32, %c2_i32 : i32
    %2 = arith.remsi %arg0, %1 : i32
    %c0_i32_0 = arith.constant 0 : i32
    %3 = arith.cmpi ne, %2, %c0_i32_0 : i32
    %c0_i32_1 = arith.constant 0 : i32
    %4 = arith.cmpi slt, %2, %c0_i32_1 : i32
    %c0_i32_2 = arith.constant 0 : i32
    %5 = arith.cmpi slt, %1, %c0_i32_2 : i32
    %6 = arith.xori %4, %5 : i1
    %7 = arith.andi %6, %3 : i1
    %8 = arith.addi %2, %1 : i32
    %9 = arith.select %7, %8, %2 : i32
    %c0_i32_3 = arith.constant 0 : i32
    %c0_i32_4 = arith.constant 0 : i32
    %c0_i32_5 = arith.constant 0 : i32
    return %9, %c0_i32_3, %c0_i32_4 : i32, i32, i32
  }
  func.func @transform_1(%arg0: i32) -> (i32, i32, i32) {
    %c1_i32 = arith.constant 1 : i32
    %0 = arith.minsi %arg0, %c1_i32 : i32
    %c0_i32 = arith.constant 0 : i32
    %c0_i32_0 = arith.constant 0 : i32
    %c0_i32_1 = arith.constant 0 : i32
    return %0, %c0_i32, %c0_i32_0 : i32, i32, i32
  }
  func.func @transform_2(%arg0: i32) -> (i32, i32, i32) {
    %c1_i32 = arith.constant 1 : i32
    %0 = arith.minsi %arg0, %c1_i32 : i32
    %c0_i32 = arith.constant 0 : i32
    %c0_i32_0 = arith.constant 0 : i32
    %c0_i32_1 = arith.constant 0 : i32
    return %0, %c0_i32, %c0_i32_0 : i32, i32, i32
  }
  func.func @transform_3(%arg0: i32) -> (i32, i32, i32) {
    %c1_i32 = arith.constant 1 : i32
    %0 = arith.minsi %arg0, %c1_i32 : i32
    %c0_i32 = arith.constant 0 : i32
    %c0_i32_0 = arith.constant 0 : i32
    %c0_i32_1 = arith.constant 0 : i32
    return %0, %c0_i32, %c0_i32_0 : i32, i32, i32
  }
  func.func @transform_4(%arg0: i32) -> (i32, i32, i32) {
    %c1_i32 = arith.constant 1 : i32
    %0 = arith.minsi %arg0, %c1_i32 : i32
    %c0_i32 = arith.constant 0 : i32
    %c0_i32_0 = arith.constant 0 : i32
    %c0_i32_1 = arith.constant 0 : i32
    return %0, %c0_i32, %c0_i32_0 : i32, i32, i32
  }
  func.func @transform_5(%arg0: i32) -> (i32, i32, i32) {
    %c0_i32 = arith.constant 0 : i32
    %c0_i32_0 = arith.constant 0 : i32
    %c0_i32_1 = arith.constant 0 : i32
    return %arg0, %c0_i32, %c0_i32_0 : i32, i32, i32
  }
}

</mosaic_0001>

<llo_original>
// kernel: momentum_model_forward.1
$region0: #{momentum_model_forward.1}
  #allocation0 [shape = 'u32[]', space=smem, size = 0x4, offset = 0x4, fixed_abs, tag = 'smem constant byte address 0x4 - core index']
  #allocation1 [shape = 'u32[144,128]{1,0:T(1,128)}', space=vmem, size = 0x12000, scoped, tag = 'internal scratch']
  %s0 = inlined_call_operand.vmem [shape: f32[2,512,24], index: 0, kind: input, shape index: {}]
  %s1 = inlined_call_operand.vmem [shape: f32[2,24,128], index: 1, kind: input, shape index: {}]
  %s2 = inlined_call_operand.vmem [shape: f32[2,1,128], index: 2, kind: input, shape index: {}]
  %s3 = inlined_call_operand.vmem [shape: f32[2,128,128], index: 3, kind: input, shape index: {}]
  %s4 = inlined_call_operand.vmem [shape: f32[2,1,128], index: 4, kind: input, shape index: {}]
  %s5 = inlined_call_operand.vmem [shape: f32[3,512,128], index: 5, kind: output, shape index: {}]
  %s6 = sld [smem:[#allocation0]]
  $region53: #{momentum_model_forward.1} parent=0
    _
  %s8 = ssub.s32 1, %s6
  %s9 = scalar_select 0, %s8, %s6
  loop: start=0, step=1, limit=5
  $region2: #{momentum_model_forward.1} parent=0 // loop_pre_header
    _
  $region3: #{momentum_model_forward.1} parent=0 // loop_header
    %s11 = sphi 0, %s15
    %p12 = scmp.ge.s32.totalorder %s11, 5
    %s45 = sphi 0, %s47
    %s48 = sphi 0, %s45
    %s49 = sphi 0, %s48
    %s65 = sphi 0, %s49
    %s75 = sphi 0, %s77
    %s78 = sphi 0, %s75
    %s79 = sphi 0, %s78
    %s95 = sphi 0, %s79
    %s105 = sphi 0, %s107
    %s108 = sphi 0, %s105
    %s109 = sphi 0, %s108
    %s125 = sphi 0, %s109
    %s135 = sphi 0, %s137
    %s138 = sphi 0, %s135
    %s139 = sphi 0, %s138
    %s155 = sphi 0, %s139
    %s165 = sphi 0, %s167
    %s168 = sphi 0, %s165
    %s169 = sphi 0, %s168
    %s185 = sphi 0, %s169
    %s191 = sphi 0, %s193
    %s194 = sphi 0, %s191
    %s195 = sphi 0, %s194
    %s211 = sphi 0, %s195
  $region4: #{momentum_model_forward.1} parent=0 // loop_header_branch
    %14 = sbr.rel (%p12) target = $region8
  $region5: #{momentum_model_forward.1} parent=0 // loop_body
    %s16 = ssub.s32 %s11, 1
    %s17 = ssub.s32 %s11, 2
    %s18 = sadd.s32 %s11, 1
    %p19 = scmp.lt.s32.totalorder %s11, 0
    %s20 = ssub.s32 0, %s11
    %s21 = scalar_select %p19, %s20, %s11
    %s22 = sand.u32 %s21, 1
    %s23 = ssub.s32 0, %s22
    %s24 = scalar_select %p19, %s23, %s22
    %p25 = scmp.ne.s32.totalorder %s24, 0
    %p26 = scmp.lt.s32.totalorder %s24, 0
    %p27 = pnand %p26, %p25
    %p28 = pneg %p27
    %s29 = sadd.s32 %s24, 2
    %s30 = scalar_select %p28, %s29, %s24
    %p31 = scmp.lt.s32.totalorder %s18, 0
    %s32 = ssub.s32 0, %s18
    %s33 = scalar_select %p31, %s32, %s18
    %s34 = sand.u32 %s33, 1
    %s35 = ssub.s32 0, %s34
    %s36 = scalar_select %p31, %s35, %s34
    %p37 = scmp.ne.s32.totalorder %s36, 0
    %p38 = scmp.lt.s32.totalorder %s36, 0
    %p39 = pnand %p38, %p37
    %p40 = pneg %p39
    %s41 = sadd.s32 %s36, 2
    %s42 = scalar_select %p40, %s41, %s36
    %s43 = ssub.s32 %s30, %s42
    %p44 = scmp.eq.s32.totalorder %s43, 0
    %s46 = sadd.s32 %s45, 1
    %s47 = scalar_select %p44, %s45, %s46
    %p50 = pneg %p44
    %p51 = scmp.eq.s32.totalorder %s11, 2
    %p52 = por %p50, %p51
    %p53 = scmp.ne.s32.totalorder %s45, %s48
    %p54 = scmp.eq.s32.totalorder %s11, 0
    %p55 = por %p53, %p54
    %p56 = scmp.ne.s32.totalorder %s45, %s48
    %p57 = scmp.eq.s32.totalorder %s16, 2
    %p58 = por %p56, %p57
    %p59 = scmp.ne.s32.totalorder %s48, %s49
    %p60 = scmp.eq.s32.totalorder %s16, 0
    %p61 = por %p59, %p60
    %p62 = scmp.ne.s32.totalorder %s48, %s49
    %p63 = scmp.eq.s32.totalorder %s17, 2
    %p64 = por %p62, %p63
    %p66 = scmp.ne.s32.totalorder %s49, %s65
    %p67 = scmp.eq.s32.totalorder %s17, 0
    %p68 = por %p66, %p67
    %p69 = scmp.lt.s32.totalorder %s11, 1
    %s70 = scalar_select %p69, %s11, 1
    %p71 = scmp.lt.s32.totalorder %s18, 1
    %s72 = scalar_select %p71, %s18, 1
    %s73 = ssub.s32 %s70, %s72
    %p74 = scmp.eq.s32.totalorder %s73, 0
    %s76 = sadd.s32 %s75, 1
    %s77 = scalar_select %p74, %s75, %s76
    %p80 = pneg %p74
    %p81 = scmp.eq.s32.totalorder %s11, 2
    %p82 = por %p80, %p81
    %p83 = scmp.ne.s32.totalorder %s75, %s78
    %p84 = scmp.eq.s32.totalorder %s11, 0
    %p85 = por %p83, %p84
    %p86 = scmp.ne.s32.totalorder %s75, %s78
    %p87 = scmp.eq.s32.totalorder %s16, 2
    %p88 = por %p86, %p87
    %p89 = scmp.ne.s32.totalorder %s78, %s79
    %p90 = scmp.eq.s32.totalorder %s16, 0
    %p91 = por %p89, %p90
    %p92 = scmp.ne.s32.totalorder %s78, %s79
    %p93 = scmp.eq.s32.totalorder %s17, 2
    %p94 = por %p92, %p93
    %p96 = scmp.ne.s32.totalorder %s79, %s95
    %p97 = scmp.eq.s32.totalorder %s17, 0
    %p98 = por %p96, %p97
    %p99 = scmp.lt.s32.totalorder %s11, 1
    %s100 = scalar_select %p99, %s11, 1
    %p101 = scmp.lt.s32.totalorder %s18, 1
    %s102 = scalar_select %p101, %s18, 1
    %s103 = ssub.s32 %s100, %s102
    %p104 = scmp.eq.s32.totalorder %s103, 0
    %s106 = sadd.s32 %s105, 1
    %s107 = scalar_select %p104, %s105, %s106
    %p110 = pneg %p104
    %p111 = scmp.eq.s32.totalorder %s11, 2
    %p112 = por %p110, %p111
    %p113 = scmp.ne.s32.totalorder %s105, %s108
    %p114 = scmp.eq.s32.totalorder %s11, 0
    %p115 = por %p113, %p114
    %p116 = scmp.ne.s32.totalorder %s105, %s108
    %p117 = scmp.eq.s32.totalorder %s16, 2
    %p118 = por %p116, %p117
    %p119 = scmp.ne.s32.totalorder %s108, %s109
    %p120 = scmp.eq.s32.totalorder %s16, 0
    %p121 = por %p119, %p120
    %p122 = scmp.ne.s32.totalorder %s108, %s109
    %p123 = scmp.eq.s32.totalorder %s17, 2
    %p124 = por %p122, %p123
    %p126 = scmp.ne.s32.totalorder %s109, %s125
    %p127 = scmp.eq.s32.totalorder %s17, 0
    %p128 = por %p126, %p127
    %p129 = scmp.lt.s32.totalorder %s11, 1
    %s130 = scalar_select %p129, %s11, 1
    %p131 = scmp.lt.s32.totalorder %s18, 1
    %s132 = scalar_select %p131, %s18, 1
    %s133 = ssub.s32 %s130, %s132
    %p134 = scmp.eq.s32.totalorder %s133, 0
    %s136 = sadd.s32 %s135, 1
    %s137 = scalar_select %p134, %s135, %s136
    %p140 = pneg %p134
    %p141 = scmp.eq.s32.totalorder %s11, 2
    %p142 = por %p140, %p141
    %p143 = scmp.ne.s32.totalorder %s135, %s138
    %p144 = scmp.eq.s32.totalorder %s11, 0
    %p145 = por %p143, %p144
    %p146 = scmp.ne.s32.totalorder %s135, %s138
    %p147 = scmp.eq.s32.totalorder %s16, 2
    %p148 = por %p146, %p147
    %p149 = scmp.ne.s32.totalorder %s138, %s139
    %p150 = scmp.eq.s32.totalorder %s16, 0
    %p151 = por %p149, %p150
    %p152 = scmp.ne.s32.totalorder %s138, %s139
    %p153 = scmp.eq.s32.totalorder %s17, 2
    %p154 = por %p152, %p153
    %p156 = scmp.ne.s32.totalorder %s139, %s155
    %p157 = scmp.eq.s32.totalorder %s17, 0
    %p158 = por %p156, %p157
    %p159 = scmp.lt.s32.totalorder %s11, 1
    %s160 = scalar_select %p159, %s11, 1
    %p161 = scmp.lt.s32.totalorder %s18, 1
    %s162 = scalar_select %p161, %s18, 1
    %s163 = ssub.s32 %s160, %s162
    %p164 = scmp.eq.s32.totalorder %s163, 0
    %s166 = sadd.s32 %s165, 1
    %s167 = scalar_select %p164, %s165, %s166
    %p170 = pneg %p164
    %p171 = scmp.eq.s32.totalorder %s11, 2
    %p172 = por %p170, %p171
    %p173 = scmp.ne.s32.totalorder %s165, %s168
    %p174 = scmp.eq.s32.totalorder %s11, 0
    %p175 = por %p173, %p174
    %p176 = scmp.ne.s32.totalorder %s165, %s168
    %p177 = scmp.eq.s32.totalorder %s16, 2
    %p178 = por %p176, %p177
    %p179 = scmp.ne.s32.totalorder %s168, %s169
    %p180 = scmp.eq.s32.totalorder %s16, 0
    %p181 = por %p179, %p180
    %p182 = scmp.ne.s32.totalorder %s168, %s169
    %p183 = scmp.eq.s32.totalorder %s17, 2
    %p184 = por %p182, %p183
    %p186 = scmp.ne.s32.totalorder %s169, %s185
    %p187 = scmp.eq.s32.totalorder %s17, 0
    %p188 = por %p186, %p187
    %s189 = ssub.s32 %s11, %s18
    %p190 = scmp.eq.s32.totalorder %s189, 0
    %s192 = sadd.s32 %s191, 1
    %s193 = scalar_select %p190, %s191, %s192
    %p196 = pneg %p190
    %p197 = scmp.eq.s32.totalorder %s11, 2
    %p198 = por %p196, %p197
    %p199 = scmp.ne.s32.totalorder %s191, %s194
    %p200 = scmp.eq.s32.totalorder %s11, 0
    %p201 = por %p199, %p200
    %p202 = scmp.ne.s32.totalorder %s191, %s194
    %p203 = scmp.eq.s32.totalorder %s16, 2
    %p204 = por %p202, %p203
    %p205 = scmp.ne.s32.totalorder %s194, %s195
    %p206 = scmp.eq.s32.totalorder %s16, 0
    %p207 = por %p205, %p206
    %p208 = scmp.ne.s32.totalorder %s194, %s195
    %p209 = scmp.eq.s32.totalorder %s17, 2
    %p210 = por %p208, %p209
    %p212 = scmp.ne.s32.totalorder %s195, %s211
    %p213 = scmp.eq.s32.totalorder %s17, 0
    %p214 = por %p212, %p213
    %p215 = scmp.le.s32.totalorder 1, %s11
    %p216 = scmp.lt.s32.totalorder %s11, 4
    %p217 = pnand %p215, %p216
    %p218 = pneg %p217
    // Predicated region
    $region9: #{momentum_model_forward.1} parent=5 // pred_check
      _
    $region10: #{momentum_model_forward.1} parent=5 // pred_check_branch
      %220 = sbr.rel (%p217) target = $region12
    $region11: #{momentum_model_forward.1} parent=5 // pred_region
      %s221 = ssub.s32 %s11, 1
    $region12: #{momentum_model_forward.1} parent=5 // pred_fallthru
      _
    %p222 = scmp.lt.s32.totalorder %s11, 3
    // Predicated region
    $region13: #{momentum_model_forward.1} parent=5 // pred_check
      %p223 = pneg %p222
    $region14: #{momentum_model_forward.1} parent=5 // pred_check_branch
      %225 = sbr.rel (%p223) target = $region16
    $region15: #{momentum_model_forward.1} parent=5 // pred_region
      // Predicated region
      $region17: #{momentum_model_forward.1} parent=15 // pred_check
        %p226 = pneg %p55
      $region18: #{momentum_model_forward.1} parent=15 // pred_check_branch
        %228 = sbr.rel (%p226) target = $region20
      $region19: #{momentum_model_forward.1} parent=15 // pred_region
        %p229 = scmp.lt.s32.totalorder %s11, 0
        %s230 = ssub.s32 0, %s11
        %s231 = scalar_select %p229, %s230, %s11
        %s232 = sand.u32 %s231, 1
        %s233 = ssub.s32 0, %s232
        %s234 = scalar_select %p229, %s233, %s232
        %p235 = scmp.ne.s32.totalorder %s234, 0
        %p236 = scmp.lt.s32.totalorder %s234, 0
        %p237 = pnand %p236, %p235
        %p238 = pneg %p237
        %s239 = sadd.s32 %s234, 2
        %s240 = scalar_select %p238, %s239, %s234
        %p241 = scmp.lt.s32.totalorder %s240, 1
        %s242 = scalar_select %p241, %s240, 1
        %s243 = smul.addr %s242, 64
        %s244 = smul.addr %s243, 8
        %s245 = scalar_lea.vmem %s0, %s244
        %p246 = scmp.lt.s32.totalorder %s11, 0
        %s247 = ssub.s32 0, %s11
        %s248 = scalar_select %p246, %s247, %s11
        %s249 = sand.u32 %s248, 1
        %s250 = ssub.s32 0, %s249
        %s251 = scalar_select %p246, %s250, %s249
        %p252 = scmp.ne.s32.totalorder %s251, 0
        %p253 = scmp.lt.s32.totalorder %s251, 0
        %p254 = pnand %p253, %p252
        %p255 = pneg %p254
        %s256 = sadd.s32 %s251, 2
        %s257 = scalar_select %p255, %s256, %s251
      $region20: #{momentum_model_forward.1} parent=15 // pred_fallthru
        _
      // Predicated region
      $region21: #{momentum_model_forward.1} parent=15 // pred_check
        %p258 = pneg %p85
      $region22: #{momentum_model_forward.1} parent=15 // pred_check_branch
        %260 = sbr.rel (%p258) target = $region24
      $region23: #{momentum_model_forward.1} parent=15 // pred_region
        %p261 = scmp.lt.s32.totalorder %s11, 1
        %s262 = scalar_select %p261, %s11, 1
        %p263 = scmp.lt.s32.totalorder %s262, 1
        %s264 = scalar_select %p263, %s262, 1
        %s265 = smul.addr %s264, 3
        %s266 = smul.addr %s265, 8
        %s267 = scalar_lea.vmem %s1, %s266
        %p268 = scmp.lt.s32.totalorder %s11, 1
        %s269 = scalar_select %p268, %s11, 1
      $region24: #{momentum_model_forward.1} parent=15 // pred_fallthru
        _
      // Predicated region
      $region25: #{momentum_model_forward.1} parent=15 // pred_check
        %p270 = pneg %p115
      $region26: #{momentum_model_forward.1} parent=15 // pred_check_branch
        %272 = sbr.rel (%p270) target = $region28
      $region27: #{momentum_model_forward.1} parent=15 // pred_region
        %p273 = scmp.lt.s32.totalorder %s11, 1
        %s274 = scalar_select %p273, %s11, 1
        %p275 = scmp.lt.s32.totalorder %s274, 1
        %s276 = scalar_select %p275, %s274, 1
        %s277 = scalar_lea.vmem %s2, %s276
        %p278 = scmp.lt.s32.totalorder %s11, 1
        %s279 = scalar_select %p278, %s11, 1
      $region28: #{momentum_model_forward.1} parent=15 // pred_fallthru
        _
      // Predicated region
      $region29: #{momentum_model_forward.1} parent=15 // pred_check
        %p280 = pneg %p145
      $region30: #{momentum_model_forward.1} parent=15 // pred_check_branch
        %282 = sbr.rel (%p280) target = $region32
      $region31: #{momentum_model_forward.1} parent=15 // pred_region
        %p283 = scmp.lt.s32.totalorder %s11, 1
        %s284 = scalar_select %p283, %s11, 1
        %p285 = scmp.lt.s32.totalorder %s284, 1
        %s286 = scalar_select %p285, %s284, 1
        %s287 = smul.addr %s286, 16
        %s288 = smul.addr %s287, 8
        %s289 = scalar_lea.vmem %s3, %s288
        %p290 = scmp.lt.s32.totalorder %s11, 1
        %s291 = scalar_select %p290, %s11, 1
      $region32: #{momentum_model_forward.1} parent=15 // pred_fallthru
        _
      // Predicated region
      $region33: #{momentum_model_forward.1} parent=15 // pred_check
        %p292 = pneg %p175
      $region34: #{momentum_model_forward.1} parent=15 // pred_check_branch
        %294 = sbr.rel (%p292) target = $region36
      $region35: #{momentum_model_forward.1} parent=15 // pred_region
        %p295 = scmp.lt.s32.totalorder %s11, 1
        %s296 = scalar_select %p295, %s11, 1
        %p297 = scmp.lt.s32.totalorder %s296, 1
        %s298 = scalar_select %p297, %s296, 1
        %s299 = scalar_lea.vmem %s4, %s298
        %p300 = scmp.lt.s32.totalorder %s11, 1
        %s301 = scalar_select %p300, %s11, 1
      $region36: #{momentum_model_forward.1} parent=15 // pred_fallthru
        _
    $region16: #{momentum_model_forward.1} parent=5 // pred_fallthru
      _
    %p302 = scmp.le.s32.totalorder 1, %s11
    %p303 = scmp.lt.s32.totalorder %s11, 4
    %p304 = pnand %p302, %p303
    %p305 = pneg %p304
    // Predicated region
    $region37: #{momentum_model_forward.1} parent=5 // pred_check
      _
    $region38: #{momentum_model_forward.1} parent=5 // pred_check_branch
      %307 = sbr.rel (%p304) target = $region40
    $region39: #{momentum_model_forward.1} parent=5 // pred_region
      %s308 = ssub.s32 %s11, 1
      %p309 = scmp.lt.s32.totalorder %s16, 0
      %s310 = ssub.s32 0, %s16
      %s311 = scalar_select %p309, %s310, %s16
      %s312 = sand.u32 %s311, 1
      %s313 = ssub.s32 0, %s312
      %s314 = scalar_select %p309, %s313, %s312
      %p315 = scmp.ne.s32.totalorder %s314, 0
      %p316 = scmp.lt.s32.totalorder %s314, 0
      %p317 = pnand %p316, %p315
      %p318 = pneg %p317
      %s319 = sadd.s32 %s314, 2
      %s320 = scalar_select %p318, %s319, %s314
      %p321 = scmp.lt.s32.totalorder %s320, 1
      %s322 = scalar_select %p321, %s320, 1
      %s323 = smul.addr %s322, 64
      %s324 = smul.addr %s323, 8
      %s325 = scalar_lea.vmem %s0, %s324
      %p326 = pneg %p61
      %p327 = pneg %p58
      %p328 = scmp.lt.s32.totalorder %s16, 1
      %s329 = scalar_select %p328, %s16, 1
      %p330 = scmp.lt.s32.totalorder %s329, 1
      %s331 = scalar_select %p330, %s329, 1
      %s332 = smul.addr %s331, 3
      %s333 = smul.addr %s332, 8
      %s334 = scalar_lea.vmem %s1, %s333
      %p335 = pneg %p91
      %p336 = pneg %p88
      %p337 = scmp.lt.s32.totalorder %s16, 1
      %s338 = scalar_select %p337, %s16, 1
      %p339 = scmp.lt.s32.totalorder %s338, 1
      %s340 = scalar_select %p339, %s338, 1
      %s341 = scalar_lea.vmem %s2, %s340
      %p342 = pneg %p121
      %p343 = pneg %p118
      %p344 = scmp.lt.s32.totalorder %s16, 1
      %s345 = scalar_select %p344, %s16, 1
      %p346 = scmp.lt.s32.totalorder %s345, 1
      %s347 = scalar_select %p346, %s345, 1
      %s348 = smul.addr %s347, 16
      %s349 = smul.addr %s348, 8
      %s350 = scalar_lea.vmem %s3, %s349
      %p351 = pneg %p151
      %p352 = pneg %p148
      %p353 = scmp.lt.s32.totalorder %s16, 1
      %s354 = scalar_select %p353, %s16, 1
      %p355 = scmp.lt.s32.totalorder %s354, 1
      %s356 = scalar_select %p355, %s354, 1
      %s357 = scalar_lea.vmem %s4, %s356
      %p358 = pneg %p181
      %p359 = pneg %p178
      %p360 = pneg %p207
      %p361 = pneg %p204
      %p362 = scmp.lt.s32.totalorder %s16, 2
      %s363 = scalar_select %p362, %s16, 2
      %s364 = smul.addr %s363, 64
      %s365 = smul.addr %s364, 8
      %s366 = scalar_lea.vmem %s5, %s365
      %p367 = scmp.lt.s32.totalorder %s16, 0
      %s368 = ssub.s32 0, %s16
      %s369 = scalar_select %p367, %s368, %s16
      %s370 = sand.u32 %s369, 1
      %s371 = ssub.s32 0, %s370
      %s372 = scalar_select %p367, %s371, %s370
      %p373 = scmp.ne.s32.totalorder %s372, 0
      %p374 = scmp.lt.s32.totalorder %s372, 0
      %p375 = pnand %p374, %p373
      %p376 = pneg %p375
      %s377 = sadd.s32 %s372, 2
      %s378 = scalar_select %p376, %s377, %s372
      %p379 = scmp.lt.s32.totalorder %s378, 1
      %s380 = scalar_select %p379, %s378, 1
      %s381 = smul.addr %s380, 64
      %s382 = smul.addr %s381, 8
      %s383 = scalar_lea.vmem %s0, %s382
      %p384 = scmp.lt.s32.totalorder %s16, 0
      %s385 = ssub.s32 0, %s16
      %s386 = scalar_select %p384, %s385, %s16
      %s387 = sand.u32 %s386, 1
      %s388 = ssub.s32 0, %s387
      %s389 = scalar_select %p384, %s388, %s387
      %p390 = scmp.ne.s32.totalorder %s389, 0
      %p391 = scmp.lt.s32.totalorder %s389, 0
      %p392 = pnand %p391, %p390
      %p393 = pneg %p392
      %s394 = sadd.s32 %s389, 2
      %s395 = scalar_select %p393, %s394, %s389
      %p396 = scmp.lt.s32.totalorder %s16, 1
      %s397 = scalar_select %p396, %s16, 1
      %p398 = scmp.lt.s32.totalorder %s397, 1
      %s399 = scalar_select %p398, %s397, 1
      %s400 = smul.addr %s399, 3
      %s401 = smul.addr %s400, 8
      %s402 = scalar_lea.vmem %s1, %s401
      %p403 = scmp.lt.s32.totalorder %s16, 1
      %s404 = scalar_select %p403, %s16, 1
      %p405 = scmp.lt.s32.totalorder %s16, 1
      %s406 = scalar_select %p405, %s16, 1
      %p407 = scmp.lt.s32.totalorder %s406, 1
      %s408 = scalar_select %p407, %s406, 1
      %s409 = scalar_lea.vmem %s2, %s408
      %p410 = scmp.lt.s32.totalorder %s16, 1
      %s411 = scalar_select %p410, %s16, 1
      %p412 = scmp.lt.s32.totalorder %s16, 1
      %s413 = scalar_select %p412, %s16, 1
      %p414 = scmp.lt.s32.totalorder %s413, 1
      %s415 = scalar_select %p414, %s413, 1
      %s416 = smul.addr %s415, 16
      %s417 = smul.addr %s416, 8
      %s418 = scalar_lea.vmem %s3, %s417
      %p419 = scmp.lt.s32.totalorder %s16, 1
      %s420 = scalar_select %p419, %s16, 1
      %p421 = scmp.lt.s32.totalorder %s16, 1
      %s422 = scalar_select %p421, %s16, 1
      %p423 = scmp.lt.s32.totalorder %s422, 1
      %s424 = scalar_select %p423, %s422, 1
      %s425 = scalar_lea.vmem %s4, %s424
      %p426 = scmp.lt.s32.totalorder %s16, 1
      %s427 = scalar_select %p426, %s16, 1
      %p428 = scmp.lt.s32.totalorder %s16, 2
      %s429 = scalar_select %p428, %s16, 2
      %s430 = smul.addr %s429, 64
      %s431 = smul.addr %s430, 8
      %s432 = scalar_lea.vmem %s5, %s431
      %v434 = vld [vmem:[%s383] sm:$0xff]
      %v435 = vld [vmem:[%s383 + $0x8] sm:$0xff]
      %v436 = vld [vmem:[%s383 + $0x10] sm:$0xff]
      %v437 = vld [vmem:[%s383 + $0x18] sm:$0xff]
      %v438 = vld [vmem:[%s383 + $0x20] sm:$0xff]
      %v439 = vld [vmem:[%s383 + $0x28] sm:$0xff]
      %v440 = vld [vmem:[%s383 + $0x30] sm:$0xff]
      %v441 = vld [vmem:[%s383 + $0x38] sm:$0xff]
      %v442 = vld [vmem:[%s383 + $0x40] sm:$0xff]
      %v443 = vld [vmem:[%s383 + $0x48] sm:$0xff]
      %v444 = vld [vmem:[%s383 + $0x50] sm:$0xff]
      %v445 = vld [vmem:[%s383 + $0x58] sm:$0xff]
      %v446 = vld [vmem:[%s383 + $0x60] sm:$0xff]
      %v447 = vld [vmem:[%s383 + $0x68] sm:$0xff]
      %v448 = vld [vmem:[%s383 + $0x70] sm:$0xff]
      %v449 = vld [vmem:[%s383 + $0x78] sm:$0xff]
      %v450 = vld [vmem:[%s383 + $0x80] sm:$0xff]
      %v451 = vld [vmem:[%s383 + $0x88] sm:$0xff]
      %v452 = vld [vmem:[%s383 + $0x90] sm:$0xff]
      %v453 = vld [vmem:[%s383 + $0x98] sm:$0xff]
      %v454 = vld [vmem:[%s383 + $0xa0] sm:$0xff]
      %v455 = vld [vmem:[%s383 + $0xa8] sm:$0xff]
      %v456 = vld [vmem:[%s383 + $0xb0] sm:$0xff]
      %v457 = vld [vmem:[%s383 + $0xb8] sm:$0xff]
      %v458 = vld [vmem:[%s383 + $0xc0] sm:$0xff]
      %v459 = vld [vmem:[%s383 + $0xc8] sm:$0xff]
      %v460 = vld [vmem:[%s383 + $0xd0] sm:$0xff]
      %v461 = vld [vmem:[%s383 + $0xd8] sm:$0xff]
      %v462 = vld [vmem:[%s383 + $0xe0] sm:$0xff]
      %v463 = vld [vmem:[%s383 + $0xe8] sm:$0xff]
      %v464 = vld [vmem:[%s383 + $0xf0] sm:$0xff]
      %v465 = vld [vmem:[%s383 + $0xf8] sm:$0xff]
      %v466 = vld [vmem:[%s383 + $0x100] sm:$0xff]
      %v467 = vld [vmem:[%s383 + $0x108] sm:$0xff]
      %v468 = vld [vmem:[%s383 + $0x110] sm:$0xff]
      %v469 = vld [vmem:[%s383 + $0x118] sm:$0xff]
      %v470 = vld [vmem:[%s383 + $0x120] sm:$0xff]
      %v471 = vld [vmem:[%s383 + $0x128] sm:$0xff]
      %v472 = vld [vmem:[%s383 + $0x130] sm:$0xff]
      %v473 = vld [vmem:[%s383 + $0x138] sm:$0xff]
      %v474 = vld [vmem:[%s383 + $0x140] sm:$0xff]
      %v475 = vld [vmem:[%s383 + $0x148] sm:$0xff]
      %v476 = vld [vmem:[%s383 + $0x150] sm:$0xff]
      %v477 = vld [vmem:[%s383 + $0x158] sm:$0xff]
      %v478 = vld [vmem:[%s383 + $0x160] sm:$0xff]
      %v479 = vld [vmem:[%s383 + $0x168] sm:$0xff]
      %v480 = vld [vmem:[%s383 + $0x170] sm:$0xff]
      %v481 = vld [vmem:[%s383 + $0x178] sm:$0xff]
      %v482 = vld [vmem:[%s383 + $0x180] sm:$0xff]
      %v483 = vld [vmem:[%s383 + $0x188] sm:$0xff]
      %v484 = vld [vmem:[%s383 + $0x190] sm:$0xff]
      %v485 = vld [vmem:[%s383 + $0x198] sm:$0xff]
      %v486 = vld [vmem:[%s383 + $0x1a0] sm:$0xff]
      %v487 = vld [vmem:[%s383 + $0x1a8] sm:$0xff]
      %v488 = vld [vmem:[%s383 + $0x1b0] sm:$0xff]
      %v489 = vld [vmem:[%s383 + $0x1b8] sm:$0xff]
      %v490 = vld [vmem:[%s383 + $0x1c0] sm:$0xff]
      %v491 = vld [vmem:[%s383 + $0x1c8] sm:$0xff]
      %v492 = vld [vmem:[%s383 + $0x1d0] sm:$0xff]
      %v493 = vld [vmem:[%s383 + $0x1d8] sm:$0xff]
      %v494 = vld [vmem:[%s383 + $0x1e0] sm:$0xff]
      %v495 = vld [vmem:[%s383 + $0x1e8] sm:$0xff]
      %v496 = vld [vmem:[%s383 + $0x1f0] sm:$0xff]
      %v497 = vld [vmem:[%s383 + $0x1f8] sm:$0xff]
      %v498 = vpack.c.bf16 %v435, %v434
      %v499 = vpack.c.bf16 %v437, %v436
      %v500 = vpack.c.bf16 %v439, %v438
      %v501 = vpack.c.bf16 %v441, %v440
      %v502 = vpack.c.bf16 %v443, %v442
      %v503 = vpack.c.bf16 %v445, %v444
      %v504 = vpack.c.bf16 %v447, %v446
      %v505 = vpack.c.bf16 %v449, %v448
      %v506 = vpack.c.bf16 %v451, %v450
      %v507 = vpack.c.bf16 %v453, %v452
      %v508 = vpack.c.bf16 %v455, %v454
      %v509 = vpack.c.bf16 %v457, %v456
      %v510 = vpack.c.bf16 %v459, %v458
      %v511 = vpack.c.bf16 %v461, %v460
      %v512 = vpack.c.bf16 %v463, %v462
      %v513 = vpack.c.bf16 %v465, %v464
      %v514 = vpack.c.bf16 %v467, %v466
      %v515 = vpack.c.bf16 %v469, %v468
      %v516 = vpack.c.bf16 %v471, %v470
      %v517 = vpack.c.bf16 %v473, %v472
      %v518 = vpack.c.bf16 %v475, %v474
      %v519 = vpack.c.bf16 %v477, %v476
      %v520 = vpack.c.bf16 %v479, %v478
      %v521 = vpack.c.bf16 %v481, %v480
      %v522 = vpack.c.bf16 %v483, %v482
      %v523 = vpack.c.bf16 %v485, %v484
      %v524 = vpack.c.bf16 %v487, %v486
      %v525 = vpack.c.bf16 %v489, %v488
      %v526 = vpack.c.bf16 %v491, %v490
      %v527 = vpack.c.bf16 %v493, %v492
      %v528 = vpack.c.bf16 %v495, %v494
      %v529 = vpack.c.bf16 %v497, %v496
      %v530 = vld [vmem:[%s402] sm:$0xff]
      %v531 = vld [vmem:[%s402 + $0x8] sm:$0xff]
      %v532 = vld [vmem:[%s402 + $0x10] sm:$0xff]
      %v533 = vpack.c.bf16 %v531, %v530
      %v534 = vpack.c.bf16 %v532, %v532
      %v535 = vld [vmem:[%s409] sm:$0x1]
      %v537 = vlaneseq
      %v538 = vshrl.u32 %v537, 7
      %v539 = vsub.s32 0, %v538
      %v540 = vrot.slane %v535, %v539
      %vm542 = vcmask 195584
      %v544 = vsel %vm542, %v498, 0
      %v547 = vsel %vm542, %v499, 0
      %v550 = vsel %vm542, %v500, 0
      %v553 = vsel %vm542, %v501, 0
      %v556 = vsel %vm542, %v502, 0
      %v559 = vsel %vm542, %v503, 0
      %v562 = vsel %vm542, %v504, 0
      %v565 = vsel %vm542, %v505, 0
      %v568 = vsel %vm542, %v506, 0
      %v571 = vsel %vm542, %v507, 0
      %v574 = vsel %vm542, %v508, 0
      %v577 = vsel %vm542, %v509, 0
      %v580 = vsel %vm542, %v510, 0
      %v583 = vsel %vm542, %v511, 0
      %v586 = vsel %vm542, %v512, 0
      %v589 = vsel %vm542, %v513, 0
      %v592 = vsel %vm542, %v514, 0
      %v595 = vsel %vm542, %v515, 0
      %v598 = vsel %vm542, %v516, 0
      %v601 = vsel %vm542, %v517, 0
      %v604 = vsel %vm542, %v518, 0
      %v607 = vsel %vm542, %v519, 0
      %v610 = vsel %vm542, %v520, 0
      %v613 = vsel %vm542, %v521, 0
      %v616 = vsel %vm542, %v522, 0
      %v619 = vsel %vm542, %v523, 0
      %v622 = vsel %vm542, %v524, 0
      %v625 = vsel %vm542, %v525, 0
      %v628 = vsel %vm542, %v526, 0
      %v631 = vsel %vm542, %v527, 0
      %v634 = vsel %vm542, %v528, 0
      %v637 = vsel %vm542, %v529, 0
      %vm639 = vcmask 1043456
      %v641 = vsel %vm639, %v534, 0
      %643 = vmatprep.subr.bf16.mxu0 0
      %644 = vmatpush1.bf16.msra.mxu0 %v533
      %645 = vmatprep.subr.bf16.mxu0 0
      %646 = vmatpush1.bf16.msra.mxu0 %v641
      %647 = vmatprep.subr.bf16.mxu0 0
      %648 = vmatpush1.bf16.msra.mxu0 0
      %649 = vmatprep.subr.bf16.mxu0 0
      %650 = vmatpush1.bf16.msra.mxu0 0
      %651 = vmatprep.subr.bf16.mxu0 0
      %652 = vmatpush1.bf16.msra.mxu0 0
      %653 = vmatprep.subr.bf16.mxu0 0
      %654 = vmatpush1.bf16.msra.mxu0 0
      %655 = vmatprep.subr.bf16.mxu0 0
      %656 = vmatpush1.bf16.msra.mxu0 0
      %657 = vmatprep.subr.bf16.mxu0 0
      %658 = vmatpush1.bf16.msra.mxu0 0
      %659 = vmatprep.subr.bf16.mxu0 0
      %660 = vmatpush1.bf16.msra.mxu0 0
      %661 = vmatprep.subr.bf16.mxu0 0
      %662 = vmatpush1.bf16.msra.mxu0 0
      %663 = vmatprep.subr.bf16.mxu0 0
      %664 = vmatpush1.bf16.msra.mxu0 0
      %665 = vmatprep.subr.bf16.mxu0 0
      %666 = vmatpush1.bf16.msra.mxu0 0
      %667 = vmatprep.subr.bf16.mxu0 0
      %668 = vmatpush1.bf16.msra.mxu0 0
      %669 = vmatprep.subr.bf16.mxu0 0
      %670 = vmatpush1.bf16.msra.mxu0 0
      %671 = vmatprep.subr.bf16.mxu0 0
      %672 = vmatpush1.bf16.msra.mxu0 0
      %673 = vmatprep.subr.bf16.mxu0 0
      %674 = vmatpush1.bf16.msra.mxu0 0
      %675 = vmatprep.mubr.bf16.mxu0 0
      %676 = vmatmul.mubr.bf16.gmra.mrb[0].mxu0 %v544
      %v677 = vpop.f32.mrb[0].mxu0
      %v678 = vadd.f32 %v540, %v677
      %v679 = vpop.f32.mrb[0].mxu0
      %v680 = vpop.f32.mrb[0].mxu0
      %v681 = vadd.f32 %v540, %v680
      %v682 = vpop.f32.mrb[0].mxu0
      %683 = vmatprep.mubr.bf16.mxu0 0
      %684 = vmatmul.mubr.bf16.gmra.mrb[0].mxu0 %v547
      %v685 = vpop.f32.mrb[0].mxu0
      %v686 = vadd.f32 %v540, %v685
      %v687 = vpop.f32.mrb[0].mxu0
      %v688 = vpop.f32.mrb[0].mxu0
      %v689 = vadd.f32 %v540, %v688
      %v690 = vpop.f32.mrb[0].mxu0
      %691 = vmatprep.mubr.bf16.mxu0 0
      %692 = vmatmul.mubr.bf16.gmra.mrb[0].mxu0 %v550
      %v693 = vpop.f32.mrb[0].mxu0
      %v694 = vadd.f32 %v540, %v693
      %v695 = vpop.f32.mrb[0].mxu0
      %v696 = vpop.f32.mrb[0].mxu0
      %v697 = vadd.f32 %v540, %v696
      %v698 = vpop.f32.mrb[0].mxu0
      %699 = vmatprep.mubr.bf16.mxu0 0
      %700 = vmatmul.mubr.bf16.gmra.mrb[0].mxu0 %v553
      %v701 = vpop.f32.mrb[0].mxu0
      %v702 = vadd.f32 %v540, %v701
      %v703 = vpop.f32.mrb[0].mxu0
      %v704 = vpop.f32.mrb[0].mxu0
      %v705 = vadd.f32 %v540, %v704
      %v706 = vpop.f32.mrb[0].mxu0
      %707 = vmatprep.mubr.bf16.mxu0 0
      %708 = vmatmul.mubr.bf16.gmra.mrb[0].mxu0 %v556
      %v709 = vpop.f32.mrb[0].mxu0
      %v710 = vadd.f32 %v540, %v709
      %v711 = vpop.f32.mrb[0].mxu0
      %v712 = vpop.f32.mrb[0].mxu0
      %v713 = vadd.f32 %v540, %v712
      %v714 = vpop.f32.mrb[0].mxu0
      %715 = vmatprep.mubr.bf16.mxu0 0
      %716 = vmatmul.mubr.bf16.gmra.mrb[0].mxu0 %v559
      %v717 = vpop.f32.mrb[0].mxu0
      %v718 = vadd.f32 %v540, %v717
      %v719 = vpop.f32.mrb[0].mxu0
      %v720 = vpop.f32.mrb[0].mxu0
      %v721 = vadd.f32 %v540, %v720
      %v722 = vpop.f32.mrb[0].mxu0
      %723 = vmatprep.mubr.bf16.mxu0 0
      %724 = vmatmul.mubr.bf16.gmra.mrb[0].mxu0 %v562
      %v725 = vpop.f32.mrb[0].mxu0
      %v726 = vadd.f32 %v540, %v725
      %v727 = vpop.f32.mrb[0].mxu0
      %v728 = vpop.f32.mrb[0].mxu0
      %v729 = vadd.f32 %v540, %v728
      %v730 = vpop.f32.mrb[0].mxu0
      %731 = vmatprep.mubr.bf16.mxu0 0
      %732 = vmatmul.mubr.bf16.gmra.mrb[0].mxu0 %v565
      %v733 = vpop.f32.mrb[0].mxu0
      %v734 = vadd.f32 %v540, %v733
      %v735 = vpop.f32.mrb[0].mxu0
      %v736 = vpop.f32.mrb[0].mxu0
      %v737 = vadd.f32 %v540, %v736
      %v738 = vpop.f32.mrb[0].mxu0
      %739 = vmatprep.mubr.bf16.mxu0 0
      %740 = vmatmul.mubr.bf16.gmra.mrb[0].mxu0 %v568
      %v741 = vpop.f32.mrb[0].mxu0
      %v742 = vadd.f32 %v540, %v741
      %v743 = vpop.f32.mrb[0].mxu0
      %v744 = vpop.f32.mrb[0].mxu0
      %v745 = vadd.f32 %v540, %v744
      %v746 = vpop.f32.mrb[0].mxu0
      %747 = vmatprep.mubr.bf16.mxu0 0
      %748 = vmatmul.mubr.bf16.gmra.mrb[0].mxu0 %v571
      %v749 = vpop.f32.mrb[0].mxu0
      %v750 = vadd.f32 %v540, %v749
      %v751 = vpop.f32.mrb[0].mxu0
      %v752 = vpop.f32.mrb[0].mxu0
      %v753 = vadd.f32 %v540, %v752
      %v754 = vpop.f32.mrb[0].mxu0
      %755 = vmatprep.mubr.bf16.mxu0 0
      %756 = vmatmul.mubr.bf16.gmra.mrb[0].mxu0 %v574
      %v757 = vpop.f32.mrb[0].mxu0
      %v758 = vadd.f32 %v540, %v757
      %v759 = vpop.f32.mrb[0].mxu0
      %v760 = vpop.f32.mrb[0].mxu0
      %v761 = vadd.f32 %v540, %v760
      %v762 = vpop.f32.mrb[0].mxu0
      %763 = vmatprep.mubr.bf16.mxu0 0
      %764 = vmatmul.mubr.bf16.gmra.mrb[0].mxu0 %v577
      %v765 = vpop.f32.mrb[0].mxu0
      %v766 = vadd.f32 %v540, %v765
      %v767 = vpop.f32.mrb[0].mxu0
      %v768 = vpop.f32.mrb[0].mxu0
      %v769 = vadd.f32 %v540, %v768
      %v770 = vpop.f32.mrb[0].mxu0
      %771 = vmatprep.mubr.bf16.mxu0 0
      %772 = vmatmul.mubr.bf16.gmra.mrb[0].mxu0 %v580
      %v773 = vpop.f32.mrb[0].mxu0
      %v774 = vadd.f32 %v540, %v773
      %v775 = vpop.f32.mrb[0].mxu0
      %v776 = vpop.f32.mrb[0].mxu0
      %v777 = vadd.f32 %v540, %v776
      %v778 = vpop.f32.mrb[0].mxu0
      %779 = vmatprep.mubr.bf16.mxu0 0
      %780 = vmatmul.mubr.bf16.gmra.mrb[0].mxu0 %v583
      %v781 = vpop.f32.mrb[0].mxu0
      %v782 = vadd.f32 %v540, %v781
      %v783 = vpop.f32.mrb[0].mxu0
      %v784 = vpop.f32.mrb[0].mxu0
      %v785 = vadd.f32 %v540, %v784
      %v786 = vpop.f32.mrb[0].mxu0
      %787 = vmatprep.mubr.bf16.mxu0 0
      %788 = vmatmul.mubr.bf16.gmra.mrb[0].mxu0 %v586
      %v789 = vpop.f32.mrb[0].mxu0
      %v790 = vadd.f32 %v540, %v789
      %v791 = vpop.f32.mrb[0].mxu0
      %v792 = vpop.f32.mrb[0].mxu0
      %v793 = vadd.f32 %v540, %v792
      %v794 = vpop.f32.mrb[0].mxu0
      %795 = vmatprep.mubr.bf16.mxu0 0
      %796 = vmatmul.mubr.bf16.gmra.mrb[0].mxu0 %v589
      %v797 = vpop.f32.mrb[0].mxu0
      %v798 = vadd.f32 %v540, %v797
      %v799 = vpop.f32.mrb[0].mxu0
      %v800 = vpop.f32.mrb[0].mxu0
      %v801 = vadd.f32 %v540, %v800
      %v802 = vpop.f32.mrb[0].mxu0
      %803 = vmatprep.mubr.bf16.mxu0 0
      %804 = vmatmul.mubr.bf16.gmra.mrb[0].mxu0 %v592
      %v805 = vpop.f32.mrb[0].mxu0
      %v806 = vadd.f32 %v540, %v805
      %v807 = vpop.f32.mrb[0].mxu0
      %v808 = vpop.f32.mrb[0].mxu0
      %v809 = vadd.f32 %v540, %v808
      %v810 = vpop.f32.mrb[0].mxu0
      %811 = vmatprep.mubr.bf16.mxu0 0
      %812 = vmatmul.mubr.bf16.gmra.mrb[0].mxu0 %v595
      %v813 = vpop.f32.mrb[0].mxu0
      %v814 = vadd.f32 %v540, %v813
      %v815 = vpop.f32.mrb[0].mxu0
      %v816 = vpop.f32.mrb[0].mxu0
      %v817 = vadd.f32 %v540, %v816
      %v818 = vpop.f32.mrb[0].mxu0
      %819 = vmatprep.mubr.bf16.mxu0 0
      %820 = vmatmul.mubr.bf16.gmra.mrb[0].mxu0 %v598
      %v821 = vpop.f32.mrb[0].mxu0
      %v822 = vadd.f32 %v540, %v821
      %v823 = vpop.f32.mrb[0].mxu0
      %v824 = vpop.f32.mrb[0].mxu0
      %v825 = vadd.f32 %v540, %v824
      %v826 = vpop.f32.mrb[0].mxu0
      %827 = vmatprep.mubr.bf16.mxu0 0
      %828 = vmatmul.mubr.bf16.gmra.mrb[0].mxu0 %v601
      %v829 = vpop.f32.mrb[0].mxu0
      %v830 = vadd.f32 %v540, %v829
      %v831 = vpop.f32.mrb[0].mxu0
      %v832 = vpop.f32.mrb[0].mxu0
      %v833 = vadd.f32 %v540, %v832
      %v834 = vpop.f32.mrb[0].mxu0
      %835 = vmatprep.mubr.bf16.mxu0 0
      %836 = vmatmul.mubr.bf16.gmra.mrb[0].mxu0 %v604
      %v837 = vpop.f32.mrb[0].mxu0
      %v838 = vadd.f32 %v540, %v837
      %v839 = vpop.f32.mrb[0].mxu0
      %v840 = vpop.f32.mrb[0].mxu0
      %v841 = vadd.f32 %v540, %v840
      %v842 = vpop.f32.mrb[0].mxu0
      %843 = vmatprep.mubr.bf16.mxu0 0
      %844 = vmatmul.mubr.bf16.gmra.mrb[0].mxu0 %v607
      %v845 = vpop.f32.mrb[0].mxu0
      %v846 = vadd.f32 %v540, %v845
      %v847 = vpop.f32.mrb[0].mxu0
      %v848 = vpop.f32.mrb[0].mxu0
      %v849 = vadd.f32 %v540, %v848
      %v850 = vpop.f32.mrb[0].mxu0
      %851 = vmatprep.mubr.bf16.mxu0 0
      %852 = vmatmul.mubr.bf16.gmra.mrb[0].mxu0 %v610
      %v853 = vpop.f32.mrb[0].mxu0
      %v854 = vadd.f32 %v540, %v853
      %v855 = vpop.f32.mrb[0].mxu0
      %v856 = vpop.f32.mrb[0].mxu0
      %v857 = vadd.f32 %v540, %v856
      %v858 = vpop.f32.mrb[0].mxu0
      %859 = vmatprep.mubr.bf16.mxu0 0
      %860 = vmatmul.mubr.bf16.gmra.mrb[0].mxu0 %v613
      %v861 = vpop.f32.mrb[0].mxu0
      %v862 = vadd.f32 %v540, %v861
      %v863 = vpop.f32.mrb[0].mxu0
      %v864 = vpop.f32.mrb[0].mxu0
      %v865 = vadd.f32 %v540, %v864
      %v866 = vpop.f32.mrb[0].mxu0
      %867 = vmatprep.mubr.bf16.mxu0 0
      %868 = vmatmul.mubr.bf16.gmra.mrb[0].mxu0 %v616
      %v869 = vpop.f32.mrb[0].mxu0
      %v870 = vadd.f32 %v540, %v869
      %v871 = vpop.f32.mrb[0].mxu0
      %v872 = vpop.f32.mrb[0].mxu0
      %v873 = vadd.f32 %v540, %v872
      %v874 = vpop.f32.mrb[0].mxu0
      %875 = vmatprep.mubr.bf16.mxu0 0
      %876 = vmatmul.mubr.bf16.gmra.mrb[0].mxu0 %v619
      %v877 = vpop.f32.mrb[0].mxu0
      %v878 = vadd.f32 %v540, %v877
      %v879 = vpop.f32.mrb[0].mxu0
      %v880 = vpop.f32.mrb[0].mxu0
      %v881 = vadd.f32 %v540, %v880
      %v882 = vpop.f32.mrb[0].mxu0
      %883 = vmatprep.mubr.bf16.mxu0 0
      %884 = vmatmul.mubr.bf16.gmra.mrb[0].mxu0 %v622
      %v885 = vpop.f32.mrb[0].mxu0
      %v886 = vadd.f32 %v540, %v885
      %v887 = vpop.f32.mrb[0].mxu0
      %v888 = vpop.f32.mrb[0].mxu0
      %v889 = vadd.f32 %v540, %v888
      %v890 = vpop.f32.mrb[0].mxu0
      %891 = vmatprep.mubr.bf16.mxu0 0
      %892 = vmatmul.mubr.bf16.gmra.mrb[0].mxu0 %v625
      %v893 = vpop.f32.mrb[0].mxu0
      %v894 = vadd.f32 %v540, %v893
      %v895 = vpop.f32.mrb[0].mxu0
      %v896 = vpop.f32.mrb[0].mxu0
      %v897 = vadd.f32 %v540, %v896
      %v898 = vpop.f32.mrb[0].mxu0
      %899 = vmatprep.mubr.bf16.mxu0 0
      %900 = vmatmul.mubr.bf16.gmra.mrb[0].mxu0 %v628
      %v901 = vpop.f32.mrb[0].mxu0
      %v902 = vadd.f32 %v540, %v901
      %v903 = vpop.f32.mrb[0].mxu0
      %v904 = vpop.f32.mrb[0].mxu0
      %v905 = vadd.f32 %v540, %v904
      %v906 = vpop.f32.mrb[0].mxu0
      %907 = vmatprep.mubr.bf16.mxu0 0
      %908 = vmatmul.mubr.bf16.gmra.mrb[0].mxu0 %v631
      %v909 = vpop.f32.mrb[0].mxu0
      %v910 = vadd.f32 %v540, %v909
      %v911 = vpop.f32.mrb[0].mxu0
      %v912 = vpop.f32.mrb[0].mxu0
      %v913 = vadd.f32 %v540, %v912
      %v914 = vpop.f32.mrb[0].mxu0
      %915 = vmatprep.mubr.bf16.mxu0 0
      %916 = vmatmul.mubr.bf16.gmra.mrb[0].mxu0 %v634
      %v917 = vpop.f32.mrb[0].mxu0
      %v918 = vadd.f32 %v540, %v917
      %v919 = vpop.f32.mrb[0].mxu0
      %v920 = vpop.f32.mrb[0].mxu0
      %v921 = vadd.f32 %v540, %v920
      %v922 = vpop.f32.mrb[0].mxu0
      %923 = vmatprep.mubr.bf16.mxu0 0
      %924 = vmatmul.mubr.bf16.gmra.mrb[0].mxu0 %v637
      %v925 = vpop.f32.mrb[0].mxu0
      %v926 = vadd.f32 %v540, %v925
      %v927 = vpop.f32.mrb[0].mxu0
      %v928 = vpop.f32.mrb[0].mxu0
      %v929 = vadd.f32 %v540, %v928
      %v930 = vpop.f32.mrb[0].mxu0
      %931 = vdwg.mxu0
      %v932 = vmax.f32 %v678, 0.0
      %v933 = vmax.f32 %v681, 0.0
      %v934 = vmax.f32 %v686, 0.0
      %v935 = vmax.f32 %v689, 0.0
      %v936 = vmax.f32 %v694, 0.0
      %v937 = vmax.f32 %v697, 0.0
      %v938 = vmax.f32 %v702, 0.0
      %v939 = vmax.f32 %v705, 0.0
      %v940 = vmax.f32 %v710, 0.0
      %v941 = vmax.f32 %v713, 0.0
      %v942 = vmax.f32 %v718, 0.0
      %v943 = vmax.f32 %v721, 0.0
      %v944 = vmax.f32 %v726, 0.0
      %v945 = vmax.f32 %v729, 0.0
      %v946 = vmax.f32 %v734, 0.0
      %v947 = vmax.f32 %v737, 0.0
      %v948 = vmax.f32 %v742, 0.0
      %v949 = vmax.f32 %v745, 0.0
      %v950 = vmax.f32 %v750, 0.0
      %v951 = vmax.f32 %v753, 0.0
      %v952 = vmax.f32 %v758, 0.0
      %v953 = vmax.f32 %v761, 0.0
      %v954 = vmax.f32 %v766, 0.0
      %v955 = vmax.f32 %v769, 0.0
      %v956 = vmax.f32 %v774, 0.0
      %v957 = vmax.f32 %v777, 0.0
      %v958 = vmax.f32 %v782, 0.0
      %v959 = vmax.f32 %v785, 0.0
      %v960 = vmax.f32 %v790, 0.0
      %v961 = vmax.f32 %v793, 0.0
      %v962 = vmax.f32 %v798, 0.0
      %v963 = vmax.f32 %v801, 0.0
      %v964 = vmax.f32 %v806, 0.0
      %v965 = vmax.f32 %v809, 0.0
      %v966 = vmax.f32 %v814, 0.0
      %v967 = vmax.f32 %v817, 0.0
      %v968 = vmax.f32 %v822, 0.0
      %v969 = vmax.f32 %v825, 0.0
      %v970 = vmax.f32 %v830, 0.0
      %v971 = vmax.f32 %v833, 0.0
      %v972 = vmax.f32 %v838, 0.0
      %v973 = vmax.f32 %v841, 0.0
      %v974 = vmax.f32 %v846, 0.0
      %v975 = vmax.f32 %v849, 0.0
      %v976 = vmax.f32 %v854, 0.0
      %v977 = vmax.f32 %v857, 0.0
      %v978 = vmax.f32 %v862, 0.0
      %v979 = vmax.f32 %v865, 0.0
      %v980 = vmax.f32 %v870, 0.0
      %v981 = vmax.f32 %v873, 0.0
      %v982 = vmax.f32 %v878, 0.0
      %v983 = vmax.f32 %v881, 0.0
      %v984 = vmax.f32 %v886, 0.0
      %v985 = vmax.f32 %v889, 0.0
      %v986 = vmax.f32 %v894, 0.0
      %v987 = vmax.f32 %v897, 0.0
      %v988 = vmax.f32 %v902, 0.0
      %v989 = vmax.f32 %v905, 0.0
      %v990 = vmax.f32 %v910, 0.0
      %v991 = vmax.f32 %v913, 0.0
      %v992 = vmax.f32 %v918, 0.0
      %v993 = vmax.f32 %v921, 0.0
      %v994 = vmax.f32 %v926, 0.0
      %v995 = vmax.f32 %v929, 0.0
      %v996 = vld [vmem:[%s418] sm:$0xff]
      %v997 = vld [vmem:[%s418 + $0x8] sm:$0xff]
      %v998 = vld [vmem:[%s418 + $0x10] sm:$0xff]
      %v999 = vld [vmem:[%s418 + $0x18] sm:$0xff]
      %v1000 = vld [vmem:[%s418 + $0x20] sm:$0xff]
      %v1001 = vld [vmem:[%s418 + $0x28] sm:$0xff]
      %v1002 = vld [vmem:[%s418 + $0x30] sm:$0xff]
      %v1003 = vld [vmem:[%s418 + $0x38] sm:$0xff]
      %v1004 = vld [vmem:[%s418 + $0x40] sm:$0xff]
      %v1005 = vld [vmem:[%s418 + $0x48] sm:$0xff]
      %v1006 = vld [vmem:[%s418 + $0x50] sm:$0xff]
      %v1007 = vld [vmem:[%s418 + $0x58] sm:$0xff]
      %v1008 = vld [vmem:[%s418 + $0x60] sm:$0xff]
      %v1009 = vld [vmem:[%s418 + $0x68] sm:$0xff]
      %v1010 = vld [vmem:[%s418 + $0x70] sm:$0xff]
      %v1011 = vld [vmem:[%s418 + $0x78] sm:$0xff]
      %v1012 = vpack.c.bf16 %v997, %v996
      %v1013 = vpack.c.bf16 %v999, %v998
      %v1014 = vpack.c.bf16 %v1001, %v1000
      %v1015 = vpack.c.bf16 %v1003, %v1002
      %v1016 = vpack.c.bf16 %v1005, %v1004
      %v1017 = vpack.c.bf16 %v1007, %v1006
      %v1018 = vpack.c.bf16 %v1009, %v1008
      %v1019 = vpack.c.bf16 %v1011, %v1010
      %v1020 = vpack.c.bf16 %v933, %v932
      %v1021 = vpack.c.bf16 %v935, %v934
      %v1022 = vpack.c.bf16 %v937, %v936
      %v1023 = vpack.c.bf16 %v939, %v938
      %v1024 = vpack.c.bf16 %v941, %v940
      %v1025 = vpack.c.bf16 %v943, %v942
      %v1026 = vpack.c.bf16 %v945, %v944
      %v1027 = vpack.c.bf16 %v947, %v946
      %v1028 = vpack.c.bf16 %v949, %v948
      %v1029 = vpack.c.bf16 %v951, %v950
      %v1030 = vpack.c.bf16 %v953, %v952
      %v1031 = vpack.c.bf16 %v955, %v954
      %v1032 = vpack.c.bf16 %v957, %v956
      %v1033 = vpack.c.bf16 %v959, %v958
      %v1034 = vpack.c.bf16 %v961, %v960
      %v1035 = vpack.c.bf16 %v963, %v962
      %v1036 = vpack.c.bf16 %v965, %v964
      %v1037 = vpack.c.bf16 %v967, %v966
      %v1038 = vpack.c.bf16 %v969, %v968
      %v1039 = vpack.c.bf16 %v971, %v970
      %v1040 = vpack.c.bf16 %v973, %v972
      %v1041 = vpack.c.bf16 %v975, %v974
      %v1042 = vpack.c.bf16 %v977, %v976
      %v1043 = vpack.c.bf16 %v979, %v978
      %v1044 = vpack.c.bf16 %v981, %v980
      %v1045 = vpack.c.bf16 %v983, %v982
      %v1046 = vpack.c.bf16 %v985, %v984
      %v1047 = vpack.c.bf16 %v987, %v986
      %v1048 = vpack.c.bf16 %v989, %v988
      %v1049 = vpack.c.bf16 %v991, %v990
      %v1050 = vpack.c.bf16 %v993, %v992
      %v1051 = vpack.c.bf16 %v995, %v994
      %v1052 = vld [vmem:[%s425] sm:$0x1]
      %v1054 = vlaneseq
      %v1055 = vshrl.u32 %v1054, 7
      %v1056 = vsub.s32 0, %v1055
      %v1057 = vrot.slane %v1052, %v1056
      %1059 = vmatprep.subr.bf16.mxu0 0
      %1060 = vmatpush1.bf16.msra.mxu0 %v1012
      %1061 = vmatprep.subr.bf16.mxu0 0
      %1062 = vmatpush1.bf16.msra.mxu0 %v1013
      %1063 = vmatprep.subr.bf16.mxu0 0
      %1064 = vmatpush1.bf16.msra.mxu0 %v1014
      %1065 = vmatprep.subr.bf16.mxu0 0
      %1066 = vmatpush1.bf16.msra.mxu0 %v1015
      %1067 = vmatprep.subr.bf16.mxu0 0
      %1068 = vmatpush1.bf16.msra.mxu0 %v1016
      %1069 = vmatprep.subr.bf16.mxu0 0
      %1070 = vmatpush1.bf16.msra.mxu0 %v1017
      %1071 = vmatprep.subr.bf16.mxu0 0
      %1072 = vmatpush1.bf16.msra.mxu0 %v1018
      %1073 = vmatprep.subr.bf16.mxu0 0
      %1074 = vmatpush1.bf16.msra.mxu0 %v1019
      %1075 = vmatprep.subr.bf16.mxu0 0
      %1076 = vmatpush1.bf16.msra.mxu0 0
      %1077 = vmatprep.subr.bf16.mxu0 0
      %1078 = vmatpush1.bf16.msra.mxu0 0
      %1079 = vmatprep.subr.bf16.mxu0 0
      %1080 = vmatpush1.bf16.msra.mxu0 0
      %1081 = vmatprep.subr.bf16.mxu0 0
      %1082 = vmatpush1.bf16.msra.mxu0 0
      %1083 = vmatprep.subr.bf16.mxu0 0
      %1084 = vmatpush1.bf16.msra.mxu0 0
      %1085 = vmatprep.subr.bf16.mxu0 0
      %1086 = vmatpush1.bf16.msra.mxu0 0
      %1087 = vmatprep.subr.bf16.mxu0 0
      %1088 = vmatpush1.bf16.msra.mxu0 0
      %1089 = vmatprep.subr.bf16.mxu0 0
      %1090 = vmatpush1.bf16.msra.mxu0 0
      %1091 = vmatprep.mubr.bf16.mxu0 0
      %1092 = vmatmul.mubr.bf16.gmra.mrb[0].mxu0 %v1020
      %v1093 = vpop.f32.mrb[0].mxu0
      %v1094 = vadd.f32 %v1057, %v1093
      %v1095 = vpop.f32.mrb[0].mxu0
      %v1096 = vpop.f32.mrb[0].mxu0
      %v1097 = vadd.f32 %v1057, %v1096
      %v1098 = vpop.f32.mrb[0].mxu0
      %1099 = vmatprep.mubr.bf16.mxu0 0
      %1100 = vmatmul.mubr.bf16.gmra.mrb[0].mxu0 %v1021
      %v1101 = vpop.f32.mrb[0].mxu0
      %v1102 = vadd.f32 %v1057, %v1101
      %v1103 = vpop.f32.mrb[0].mxu0
      %v1104 = vpop.f32.mrb[0].mxu0
      %v1105 = vadd.f32 %v1057, %v1104
      %v1106 = vpop.f32.mrb[0].mxu0
      %1107 = vmatprep.mubr.bf16.mxu0 0
      %1108 = vmatmul.mubr.bf16.gmra.mrb[0].mxu0 %v1022
      %v1109 = vpop.f32.mrb[0].mxu0
      %v1110 = vadd.f32 %v1057, %v1109
      %v1111 = vpop.f32.mrb[0].mxu0
      %v1112 = vpop.f32.mrb[0].mxu0
      %v1113 = vadd.f32 %v1057, %v1112
      %v1114 = vpop.f32.mrb[0].mxu0
      %1115 = vmatprep.mubr.bf16.mxu0 0
      %1116 = vmatmul.mubr.bf16.gmra.mrb[0].mxu0 %v1023
      %v1117 = vpop.f32.mrb[0].mxu0
      %v1118 = vadd.f32 %v1057, %v1117
      %v1119 = vpop.f32.mrb[0].mxu0
      %v1120 = vpop.f32.mrb[0].mxu0
      %v1121 = vadd.f32 %v1057, %v1120
      %v1122 = vpop.f32.mrb[0].mxu0
      %1123 = vmatprep.mubr.bf16.mxu0 0
      %1124 = vmatmul.mubr.bf16.gmra.mrb[0].mxu0 %v1024
      %v1125 = vpop.f32.mrb[0].mxu0
      %v1126 = vadd.f32 %v1057, %v1125
      %v1127 = vpop.f32.mrb[0].mxu0
      %v1128 = vpop.f32.mrb[0].mxu0
      %v1129 = vadd.f32 %v1057, %v1128
      %v1130 = vpop.f32.mrb[0].mxu0
      %1131 = vmatprep.mubr.bf16.mxu0 0
      %1132 = vmatmul.mubr.bf16.gmra.mrb[0].mxu0 %v1025
      %v1133 = vpop.f32.mrb[0].mxu0
      %v1134 = vadd.f32 %v1057, %v1133
      %v1135 = vpop.f32.mrb[0].mxu0
      %v1136 = vpop.f32.mrb[0].mxu0
      %v1137 = vadd.f32 %v1057, %v1136
      %v1138 = vpop.f32.mrb[0].mxu0
      %1139 = vmatprep.mubr.bf16.mxu0 0
      %1140 = vmatmul.mubr.bf16.gmra.mrb[0].mxu0 %v1026
      %v1141 = vpop.f32.mrb[0].mxu0
      %v1142 = vadd.f32 %v1057, %v1141
      %v1143 = vpop.f32.mrb[0].mxu0
      %v1144 = vpop.f32.mrb[0].mxu0
      %v1145 = vadd.f32 %v1057, %v1144
      %v1146 = vpop.f32.mrb[0].mxu0
      %1147 = vmatprep.mubr.bf16.mxu0 0
      %1148 = vmatmul.mubr.bf16.gmra.mrb[0].mxu0 %v1027
      %v1149 = vpop.f32.mrb[0].mxu0
      %v1150 = vadd.f32 %v1057, %v1149
      %v1151 = vpop.f32.mrb[0].mxu0
      %v1152 = vpop.f32.mrb[0].mxu0
      %v1153 = vadd.f32 %v1057, %v1152
      %v1154 = vpop.f32.mrb[0].mxu0
      %1155 = vmatprep.mubr.bf16.mxu0 0
      %1156 = vmatmul.mubr.bf16.gmra.mrb[0].mxu0 %v1028
      %v1157 = vpop.f32.mrb[0].mxu0
      %v1158 = vadd.f32 %v1057, %v1157
      %v1159 = vpop.f32.mrb[0].mxu0
      %v1160 = vpop.f32.mrb[0].mxu0
      %v1161 = vadd.f32 %v1057, %v1160
      %v1162 = vpop.f32.mrb[0].mxu0
      %1163 = vmatprep.mubr.bf16.mxu0 0
      %1164 = vmatmul.mubr.bf16.gmra.mrb[0].mxu0 %v1029
      %v1165 = vpop.f32.mrb[0].mxu0
      %v1166 = vadd.f32 %v1057, %v1165
      %v1167 = vpop.f32.mrb[0].mxu0
      %v1168 = vpop.f32.mrb[0].mxu0
      %v1169 = vadd.f32 %v1057, %v1168
      %v1170 = vpop.f32.mrb[0].mxu0
      %1171 = vmatprep.mubr.bf16.mxu0 0
      %1172 = vmatmul.mubr.bf16.gmra.mrb[0].mxu0 %v1030
      %v1173 = vpop.f32.mrb[0].mxu0
      %v1174 = vadd.f32 %v1057, %v1173
      %v1175 = vpop.f32.mrb[0].mxu0
      %v1176 = vpop.f32.mrb[0].mxu0
      %v1177 = vadd.f32 %v1057, %v1176
      %v1178 = vpop.f32.mrb[0].mxu0
      %1179 = vmatprep.mubr.bf16.mxu0 0
      %1180 = vmatmul.mubr.bf16.gmra.mrb[0].mxu0 %v1031
      %v1181 = vpop.f32.mrb[0].mxu0
      %v1182 = vadd.f32 %v1057, %v1181
      %v1183 = vpop.f32.mrb[0].mxu0
      %v1184 = vpop.f32.mrb[0].mxu0
      %v1185 = vadd.f32 %v1057, %v1184
      %v1186 = vpop.f32.mrb[0].mxu0
      %1187 = vmatprep.mubr.bf16.mxu0 0
      %1188 = vmatmul.mubr.bf16.gmra.mrb[0].mxu0 %v1032
      %v1189 = vpop.f32.mrb[0].mxu0
      %v1190 = vadd.f32 %v1057, %v1189
      %v1191 = vpop.f32.mrb[0].mxu0
      %v1192 = vpop.f32.mrb[0].mxu0
      %v1193 = vadd.f32 %v1057, %v1192
      %v1194 = vpop.f32.mrb[0].mxu0
      %1195 = vmatprep.mubr.bf16.mxu0 0
      %1196 = vmatmul.mubr.bf16.gmra.mrb[0].mxu0 %v1033
      %v1197 = vpop.f32.mrb[0].mxu0
      %v1198 = vadd.f32 %v1057, %v1197
      %v1199 = vpop.f32.mrb[0].mxu0
      %v1200 = vpop.f32.mrb[0].mxu0
      %v1201 = vadd.f32 %v1057, %v1200
      %v1202 = vpop.f32.mrb[0].mxu0
      %1203 = vmatprep.mubr.bf16.mxu0 0
      %1204 = vmatmul.mubr.bf16.gmra.mrb[0].mxu0 %v1034
      %v1205 = vpop.f32.mrb[0].mxu0
      %v1206 = vadd.f32 %v1057, %v1205
      %v1207 = vpop.f32.mrb[0].mxu0
      %v1208 = vpop.f32.mrb[0].mxu0
      %v1209 = vadd.f32 %v1057, %v1208
      %v1210 = vpop.f32.mrb[0].mxu0
      %1211 = vmatprep.mubr.bf16.mxu0 0
      %1212 = vmatmul.mubr.bf16.gmra.mrb[0].mxu0 %v1035
      %v1213 = vpop.f32.mrb[0].mxu0
      %v1214 = vadd.f32 %v1057, %v1213
      %v1215 = vpop.f32.mrb[0].mxu0
      %v1216 = vpop.f32.mrb[0].mxu0
      %v1217 = vadd.f32 %v1057, %v1216
      %v1218 = vpop.f32.mrb[0].mxu0
      %1219 = vmatprep.mubr.bf16.mxu0 0
      %1220 = vmatmul.mubr.bf16.gmra.mrb[0].mxu0 %v1036
      %v1221 = vpop.f32.mrb[0].mxu0
      %v1222 = vadd.f32 %v1057, %v1221
      %v1223 = vpop.f32.mrb[0].mxu0
      %v1224 = vpop.f32.mrb[0].mxu0
      %v1225 = vadd.f32 %v1057, %v1224
      %v1226 = vpop.f32.mrb[0].mxu0
      %1227 = vmatprep.mubr.bf16.mxu0 0
      %1228 = vmatmul.mubr.bf16.gmra.mrb[0].mxu0 %v1037
      %v1229 = vpop.f32.mrb[0].mxu0
      %v1230 = vadd.f32 %v1057, %v1229
      %v1231 = vpop.f32.mrb[0].mxu0
      %v1232 = vpop.f32.mrb[0].mxu0
      %v1233 = vadd.f32 %v1057, %v1232
      %v1234 = vpop.f32.mrb[0].mxu0
      %1235 = vmatprep.mubr.bf16.mxu0 0
      %1236 = vmatmul.mubr.bf16.gmra.mrb[0].mxu0 %v1038
      %v1237 = vpop.f32.mrb[0].mxu0
      %v1238 = vadd.f32 %v1057, %v1237
      %v1239 = vpop.f32.mrb[0].mxu0
      %v1240 = vpop.f32.mrb[0].mxu0
      %v1241 = vadd.f32 %v1057, %v1240
      %v1242 = vpop.f32.mrb[0].mxu0
      %1243 = vmatprep.mubr.bf16.mxu0 0
      %1244 = vmatmul.mubr.bf16.gmra.mrb[0].mxu0 %v1039
      %v1245 = vpop.f32.mrb[0].mxu0
      %v1246 = vadd.f32 %v1057, %v1245
      %v1247 = vpop.f32.mrb[0].mxu0
      %v1248 = vpop.f32.mrb[0].mxu0
      %v1249 = vadd.f32 %v1057, %v1248
      %v1250 = vpop.f32.mrb[0].mxu0
      %1251 = vmatprep.mubr.bf16.mxu0 0
      %1252 = vmatmul.mubr.bf16.gmra.mrb[0].mxu0 %v1040
      %v1253 = vpop.f32.mrb[0].mxu0
      %v1254 = vadd.f32 %v1057, %v1253
      %v1255 = vpop.f32.mrb[0].mxu0
      %v1256 = vpop.f32.mrb[0].mxu0
      %v1257 = vadd.f32 %v1057, %v1256
      %v1258 = vpop.f32.mrb[0].mxu0
      %1259 = vmatprep.mubr.bf16.mxu0 0
      %1260 = vmatmul.mubr.bf16.gmra.mrb[0].mxu0 %v1041
      %v1261 = vpop.f32.mrb[0].mxu0
      %v1262 = vadd.f32 %v1057, %v1261
      %v1263 = vpop.f32.mrb[0].mxu0
      %v1264 = vpop.f32.mrb[0].mxu0
      %v1265 = vadd.f32 %v1057, %v1264
      %v1266 = vpop.f32.mrb[0].mxu0
      %1267 = vmatprep.mubr.bf16.mxu0 0
      %1268 = vmatmul.mubr.bf16.gmra.mrb[0].mxu0 %v1042
      %v1269 = vpop.f32.mrb[0].mxu0
      %v1270 = vadd.f32 %v1057, %v1269
      %v1271 = vpop.f32.mrb[0].mxu0
      %v1272 = vpop.f32.mrb[0].mxu0
      %v1273 = vadd.f32 %v1057, %v1272
      %v1274 = vpop.f32.mrb[0].mxu0
      %1275 = vmatprep.mubr.bf16.mxu0 0
      %1276 = vmatmul.mubr.bf16.gmra.mrb[0].mxu0 %v1043
      %v1277 = vpop.f32.mrb[0].mxu0
      %v1278 = vadd.f32 %v1057, %v1277
      %v1279 = vpop.f32.mrb[0].mxu0
      %v1280 = vpop.f32.mrb[0].mxu0
      %v1281 = vadd.f32 %v1057, %v1280
      %v1282 = vpop.f32.mrb[0].mxu0
      %1283 = vmatprep.mubr.bf16.mxu0 0
      %1284 = vmatmul.mubr.bf16.gmra.mrb[0].mxu0 %v1044
      %v1285 = vpop.f32.mrb[0].mxu0
      %v1286 = vadd.f32 %v1057, %v1285
      %v1287 = vpop.f32.mrb[0].mxu0
      %v1288 = vpop.f32.mrb[0].mxu0
      %v1289 = vadd.f32 %v1057, %v1288
      %v1290 = vpop.f32.mrb[0].mxu0
      %1291 = vmatprep.mubr.bf16.mxu0 0
      %1292 = vmatmul.mubr.bf16.gmra.mrb[0].mxu0 %v1045
      %v1293 = vpop.f32.mrb[0].mxu0
      %v1294 = vadd.f32 %v1057, %v1293
      %v1295 = vpop.f32.mrb[0].mxu0
      %v1296 = vpop.f32.mrb[0].mxu0
      %v1297 = vadd.f32 %v1057, %v1296
      %v1298 = vpop.f32.mrb[0].mxu0
      %1299 = vmatprep.mubr.bf16.mxu0 0
      %1300 = vmatmul.mubr.bf16.gmra.mrb[0].mxu0 %v1046
      %v1301 = vpop.f32.mrb[0].mxu0
      %v1302 = vadd.f32 %v1057, %v1301
      %v1303 = vpop.f32.mrb[0].mxu0
      %v1304 = vpop.f32.mrb[0].mxu0
      %v1305 = vadd.f32 %v1057, %v1304
      %v1306 = vpop.f32.mrb[0].mxu0
      %1307 = vmatprep.mubr.bf16.mxu0 0
      %1308 = vmatmul.mubr.bf16.gmra.mrb[0].mxu0 %v1047
      %v1309 = vpop.f32.mrb[0].mxu0
      %v1310 = vadd.f32 %v1057, %v1309
      %v1311 = vpop.f32.mrb[0].mxu0
      %v1312 = vpop.f32.mrb[0].mxu0
      %v1313 = vadd.f32 %v1057, %v1312
      %v1314 = vpop.f32.mrb[0].mxu0
      %1315 = vmatprep.mubr.bf16.mxu0 0
      %1316 = vmatmul.mubr.bf16.gmra.mrb[0].mxu0 %v1048
      %v1317 = vpop.f32.mrb[0].mxu0
      %v1318 = vadd.f32 %v1057, %v1317
      %v1319 = vpop.f32.mrb[0].mxu0
      %v1320 = vpop.f32.mrb[0].mxu0
      %v1321 = vadd.f32 %v1057, %v1320
      %v1322 = vpop.f32.mrb[0].mxu0
      %1323 = vmatprep.mubr.bf16.mxu0 0
      %1324 = vmatmul.mubr.bf16.gmra.mrb[0].mxu0 %v1049
      %v1325 = vpop.f32.mrb[0].mxu0
      %v1326 = vadd.f32 %v1057, %v1325
      %v1327 = vpop.f32.mrb[0].mxu0
      %v1328 = vpop.f32.mrb[0].mxu0
      %v1329 = vadd.f32 %v1057, %v1328
      %v1330 = vpop.f32.mrb[0].mxu0
      %1331 = vmatprep.mubr.bf16.mxu0 0
      %1332 = vmatmul.mubr.bf16.gmra.mrb[0].mxu0 %v1050
      %v1333 = vpop.f32.mrb[0].mxu0
      %v1334 = vadd.f32 %v1057, %v1333
      %v1335 = vpop.f32.mrb[0].mxu0
      %v1336 = vpop.f32.mrb[0].mxu0
      %v1337 = vadd.f32 %v1057, %v1336
      %v1338 = vpop.f32.mrb[0].mxu0
      %1339 = vmatprep.mubr.bf16.mxu0 0
      %1340 = vmatmul.mubr.bf16.gmra.mrb[0].mxu0 %v1051
      %v1341 = vpop.f32.mrb[0].mxu0
      %v1342 = vadd.f32 %v1057, %v1341
      %v1343 = vpop.f32.mrb[0].mxu0
      %v1344 = vpop.f32.mrb[0].mxu0
      %v1345 = vadd.f32 %v1057, %v1344
      %v1346 = vpop.f32.mrb[0].mxu0
      %1347 = vdwg.mxu0
      %1348 = vst [vmem:[%s432] sm:$0xff] %v1094
      %1349 = vst [vmem:[%s432 + $0x8] sm:$0xff] %v1097
      %1350 = vst [vmem:[%s432 + $0x10] sm:$0xff] %v1102
      %1351 = vst [vmem:[%s432 + $0x18] sm:$0xff] %v1105
      %1352 = vst [vmem:[%s432 + $0x20] sm:$0xff] %v1110
      %1353 = vst [vmem:[%s432 + $0x28] sm:$0xff] %v1113
      %1354 = vst [vmem:[%s432 + $0x30] sm:$0xff] %v1118
      %1355 = vst [vmem:[%s432 + $0x38] sm:$0xff] %v1121
      %1356 = vst [vmem:[%s432 + $0x40] sm:$0xff] %v1126
      %1357 = vst [vmem:[%s432 + $0x48] sm:$0xff] %v1129
      %1358 = vst [vmem:[%s432 + $0x50] sm:$0xff] %v1134
      %1359 = vst [vmem:[%s432 + $0x58] sm:$0xff] %v1137
      %1360 = vst [vmem:[%s432 + $0x60] sm:$0xff] %v1142
      %1361 = vst [vmem:[%s432 + $0x68] sm:$0xff] %v1145
      %1362 = vst [vmem:[%s432 + $0x70] sm:$0xff] %v1150
      %1363 = vst [vmem:[%s432 + $0x78] sm:$0xff] %v1153
      %1364 = vst [vmem:[%s432 + $0x80] sm:$0xff] %v1158
      %1365 = vst [vmem:[%s432 + $0x88] sm:$0xff] %v1161
      %1366 = vst [vmem:[%s432 + $0x90] sm:$0xff] %v1166
      %1367 = vst [vmem:[%s432 + $0x98] sm:$0xff] %v1169
      %1368 = vst [vmem:[%s432 + $0xa0] sm:$0xff] %v1174
      %1369 = vst [vmem:[%s432 + $0xa8] sm:$0xff] %v1177
      %1370 = vst [vmem:[%s432 + $0xb0] sm:$0xff] %v1182
      %1371 = vst [vmem:[%s432 + $0xb8] sm:$0xff] %v1185
      %1372 = vst [vmem:[%s432 + $0xc0] sm:$0xff] %v1190
      %1373 = vst [vmem:[%s432 + $0xc8] sm:$0xff] %v1193
      %1374 = vst [vmem:[%s432 + $0xd0] sm:$0xff] %v1198
      %1375 = vst [vmem:[%s432 + $0xd8] sm:$0xff] %v1201
      %1376 = vst [vmem:[%s432 + $0xe0] sm:$0xff] %v1206
      %1377 = vst [vmem:[%s432 + $0xe8] sm:$0xff] %v1209
      %1378 = vst [vmem:[%s432 + $0xf0] sm:$0xff] %v1214
      %1379 = vst [vmem:[%s432 + $0xf8] sm:$0xff] %v1217
      %1380 = vst [vmem:[%s432 + $0x100] sm:$0xff] %v1222
      %1381 = vst [vmem:[%s432 + $0x108] sm:$0xff] %v1225
      %1382 = vst [vmem:[%s432 + $0x110] sm:$0xff] %v1230
      %1383 = vst [vmem:[%s432 + $0x118] sm:$0xff] %v1233
      %1384 = vst [vmem:[%s432 + $0x120] sm:$0xff] %v1238
      %1385 = vst [vmem:[%s432 + $0x128] sm:$0xff] %v1241
      %1386 = vst [vmem:[%s432 + $0x130] sm:$0xff] %v1246
      %1387 = vst [vmem:[%s432 + $0x138] sm:$0xff] %v1249
      %1388 = vst [vmem:[%s432 + $0x140] sm:$0xff] %v1254
      %1389 = vst [vmem:[%s432 + $0x148] sm:$0xff] %v1257
      %1390 = vst [vmem:[%s432 + $0x150] sm:$0xff] %v1262
      %1391 = vst [vmem:[%s432 + $0x158] sm:$0xff] %v1265
      %1392 = vst [vmem:[%s432 + $0x160] sm:$0xff] %v1270
      %1393 = vst [vmem:[%s432 + $0x168] sm:$0xff] %v1273
      %1394 = vst [vmem:[%s432 + $0x170] sm:$0xff] %v1278
      %1395 = vst [vmem:[%s432 + $0x178] sm:$0xff] %v1281
      %1396 = vst [vmem:[%s432 + $0x180] sm:$0xff] %v1286
      %1397 = vst [vmem:[%s432 + $0x188] sm:$0xff] %v1289
      %1398 = vst [vmem:[%s432 + $0x190] sm:$0xff] %v1294
      %1399 = vst [vmem:[%s432 + $0x198] sm:$0xff] %v1297
      %1400 = vst [vmem:[%s432 + $0x1a0] sm:$0xff] %v1302
      %1401 = vst [vmem:[%s432 + $0x1a8] sm:$0xff] %v1305
      %1402 = vst [vmem:[%s432 + $0x1b0] sm:$0xff] %v1310
      %1403 = vst [vmem:[%s432 + $0x1b8] sm:$0xff] %v1313
      %1404 = vst [vmem:[%s432 + $0x1c0] sm:$0xff] %v1318
      %1405 = vst [vmem:[%s432 + $0x1c8] sm:$0xff] %v1321
      %1406 = vst [vmem:[%s432 + $0x1d0] sm:$0xff] %v1326
      %1407 = vst [vmem:[%s432 + $0x1d8] sm:$0xff] %v1329
      %1408 = vst [vmem:[%s432 + $0x1e0] sm:$0xff] %v1334
      %1409 = vst [vmem:[%s432 + $0x1e8] sm:$0xff] %v1337
      %1410 = vst [vmem:[%s432 + $0x1f0] sm:$0xff] %v1342
      %1411 = vst [vmem:[%s432 + $0x1f8] sm:$0xff] %v1345
      %p1412 = scmp.lt.s32.totalorder %s16, 2
      %s1413 = scalar_select %p1412, %s16, 2
      %s1414 = smul.addr %s1413, 64
      %s1415 = smul.addr %s1414, 8
      %s1416 = scalar_lea.vmem %s5, %s1415
      // Predicated region
      $region41: #{momentum_model_forward.1} parent=39 // pred_check
        %p1417 = pneg %p204
      $region42: #{momentum_model_forward.1} parent=39 // pred_check_branch
        %1419 = sbr.rel (%p1417) target = $region44
      $region43: #{momentum_model_forward.1} parent=39 // pred_region
        _
      $region44: #{momentum_model_forward.1} parent=39 // pred_fallthru
        _
    $region40: #{momentum_model_forward.1} parent=5 // pred_fallthru
      _
    %p1420 = scmp.le.s32.totalorder 2, %s11
    // Predicated region
    $region45: #{momentum_model_forward.1} parent=5 // pred_check
      %p1421 = pneg %p1420
    $region46: #{momentum_model_forward.1} parent=5 // pred_check_branch
      %1423 = sbr.rel (%p1421) target = $region48
    $region47: #{momentum_model_forward.1} parent=5 // pred_region
      %s1424 = ssub.s32 %s11, 2
      // Predicated region
      $region49: #{momentum_model_forward.1} parent=47 // pred_check
        %p1425 = pneg %p210
      $region50: #{momentum_model_forward.1} parent=47 // pred_check_branch
        %1427 = sbr.rel (%p1425) target = $region52
      $region51: #{momentum_model_forward.1} parent=47 // pred_region
        %p1428 = scmp.lt.s32.totalorder %s17, 2
        %s1429 = scalar_select %p1428, %s17, 2
        %s1430 = smul.addr %s1429, 64
        %s1431 = smul.addr %s1430, 8
        %s1432 = scalar_lea.vmem %s5, %s1431
      $region52: #{momentum_model_forward.1} parent=47 // pred_fallthru
        _
    $region48: #{momentum_model_forward.1} parent=5 // pred_fallthru
      _
  $region6: #{momentum_model_forward.1} parent=0 // loop_footer
    %s15 = sadd.s32 1, %s11
  $region7: #{momentum_model_forward.1} parent=0 // loop_footer_branch
    %10 = sbr.rel target = $region3
  $region8: #{momentum_model_forward.1} parent=0 // loop_exit
    _

</llo_original>
